<compile_context>
chip_gen: v5e
topology: v5e:2x2
jax: 0.10.0
libtpu: 0.0.40
codegen_flags: <defaults>
</compile_context>

<pallas_src>
import functools

import jax
import jax.numpy as jnp
from jax.experimental import pallas as pl
from jax.experimental.pallas import tpu as pltpu

_LANE = 128


# --------------------------------------------------------------------------
# Kernels
# --------------------------------------------------------------------------
def _edge_drop_prng_kernel(seed_ref, vals_ref, newvals_ref, mask_ref, *,
                           thresh_i32, scale):
    """In-kernel hardware PRNG path (no bits input stream)."""
    # Per-tile seed: mix the grid position into the base seed so every tile
    # draws an independent stream (grid axis is 'parallel').
    pltpu.prng_seed(seed_ref[0] + pl.program_id(0))
    bits = pltpu.prng_random_bits(vals_ref.shape)
    if bits.dtype != jnp.int32:                       # trace-time check
        bits = pltpu.bitcast(bits, jnp.int32)
    # P(bits >= thresh) == keep_rate  (bits uniform over [-2^31, 2^31)).
    keep = bits >= jnp.int32(thresh_i32)

    scaled = vals_ref[...] * jnp.float32(scale)       # scale = 1/keep_rate or 1
    newvals_ref[...] = jnp.where(keep, scaled, jnp.zeros_like(scaled))
    mask_ref[...] = keep.astype(jnp.int8)


def _edge_drop_bits16_kernel(bits_ref, vals_ref, newvals_ref, mask_ref, *,
                             thresh_i16, scale):
    """Fallback path: 16-bit random words streamed from the host."""
    keep = bits_ref[...] >= jnp.int16(thresh_i16)
    scaled = vals_ref[...] * jnp.float32(scale)
    newvals_ref[...] = jnp.where(keep, scaled, jnp.zeros_like(scaled))
    mask_ref[...] = keep.astype(jnp.int8)


# --------------------------------------------------------------------------
# Tiling
# --------------------------------------------------------------------------
def _round_up(x, m):
    return ((x + m - 1) // m) * m


def _choose_tiling(num_edges, *, lane=_LANE, max_tile_rows=1024,
                   min_grid_steps=2):
    """Pick (padded_rows, tile_rows); tile_rows is a multiple of 32."""
    rows = _round_up((num_edges + lane - 1) // lane, 32)
    if rows <= 64:
        # Tiny input: a single grid step is cheapest.
        tile_rows = rows
    else:
        # At least `min_grid_steps` steps (lets v7x's second TC contribute),
        # capped at max_tile_rows (HBM streaming plateaus at 512-1024 rows).
        tile_rows = min(max_tile_rows,
                        _round_up(-(-rows // min_grid_steps), 32))
    rows_padded = _round_up(rows, tile_rows)
    return rows_padded, tile_rows


# --------------------------------------------------------------------------
# Wrapper
# --------------------------------------------------------------------------
_USE_HOST_BITS = False   # flipped permanently if the in-kernel PRNG won't lower


def edge_drop(vals, idxs, keep_rate, seed, *, resize_val=False,
              max_tile_rows=1024):
    """Pallas EdgeDrop.

    vals: float32 [E]   sparse-adj values
    idxs: int32   [2,E] sparse-adj indices (passed through untouched)
    keep_rate: python float in (0, 1]
    seed: python int seed for the per-edge Bernoulli mask

    Returns (new_vals [E], idxs [2,E], mask [E] int8) with dropped edges zeroed
    in new_vals and marked 0 in mask.
    """
    global _USE_HOST_BITS
    keep_rate = float(keep_rate)
    if keep_rate == 1.0:
        # PyTorch short-circuit: return adjacency unchanged.
        return vals, idxs, jnp.ones(vals.shape, jnp.int8)

    E = vals.shape[0]
    rows_padded, tile_rows = _choose_tiling(E, max_tile_rows=max_tile_rows)
    E_pad = rows_padded * _LANE
    grid = (rows_padded // tile_rows,)

    # Pad values to the tile boundary with zeros; padded new_vals are therefore
    # zero and both outputs are sliced back to E below, so padding is harmless.
    vals_padded = jnp.pad(vals.astype(jnp.float32), (0, E_pad - E))
    vals2d = vals_padded.reshape(rows_padded, _LANE)

    scale = (1.0 / keep_rate) if resize_val else 1.0

    out_shapes = (jax.ShapeDtypeStruct((rows_padded, _LANE), jnp.float32),
                  jax.ShapeDtypeStruct((rows_padded, _LANE), jnp.int8))
    out_specs = [pl.BlockSpec((tile_rows, _LANE), lambda i, *_: (i, 0)),
                 pl.BlockSpec((tile_rows, _LANE), lambda i, *_: (i, 0))]
    cparams = pltpu.CompilerParams(dimension_semantics=("parallel",))
    # ~9 B/edge: 4 B vals read, 4 B new_vals write, 1 B mask write.
    cost = pl.CostEstimate(flops=2 * E_pad, transcendentals=0,
                           bytes_accessed=9 * E_pad)

    def _run_prng():
        # thresh such that P(int32_bits >= thresh) == keep_rate.
        thresh = int(round(2.0 ** 31 - keep_rate * 2.0 ** 32))
        thresh = max(min(thresh, 2 ** 31 - 1), -(2 ** 31))
        kern = functools.partial(_edge_drop_prng_kernel,
                                 thresh_i32=thresh, scale=scale)
        seed_arr = jnp.asarray([int(seed)], dtype=jnp.int32)
        return pl.pallas_call(
            kern,
            out_shape=out_shapes,
            grid_spec=pltpu.PrefetchScalarGridSpec(
                num_scalar_prefetch=1,          # seed -> SMEM
                grid=grid,
                in_specs=[pl.BlockSpec((tile_rows, _LANE),
                                       lambda i, *_: (i, 0))],   # vals
                out_specs=out_specs),
            compiler_params=cparams,
            cost_estimate=cost,
        )(seed_arr, vals2d)

    def _run_bits16():
        # Fallback: 16-bit host random words (halves the bits stream vs 32-bit).
        thresh = int(round(2.0 ** 15 - keep_rate * 2.0 ** 16))
        thresh = max(min(thresh, 2 ** 15 - 1), -(2 ** 15))
        kern = functools.partial(_edge_drop_bits16_kernel,
                                 thresh_i16=thresh, scale=scale)
        key = jax.random.PRNGKey(int(seed))
        bits = jax.lax.bitcast_convert_type(
            jax.random.bits(key, (rows_padded, _LANE), dtype=jnp.uint16),
            jnp.int16)
        return pl.pallas_call(
            kern,
            out_shape=out_shapes,
            grid_spec=pltpu.PrefetchScalarGridSpec(
                num_scalar_prefetch=0,
                grid=grid,
                in_specs=[pl.BlockSpec((tile_rows, _LANE), lambda i: (i, 0)),
                          pl.BlockSpec((tile_rows, _LANE), lambda i: (i, 0))],
                out_specs=out_specs),
            compiler_params=cparams,
            cost_estimate=cost,
        )(bits, vals2d)

    new2d = mask2d = None
    if not _USE_HOST_BITS:
        try:
            new2d, mask2d = _run_prng()
        except Exception:                       # lowering failure -> fallback
            _USE_HOST_BITS = True
    if new2d is None:
        new2d, mask2d = _run_bits16()

    new_vals = new2d.reshape(E_pad)[:E]
    mask = mask2d.reshape(E_pad)[:E]
    return new_vals, idxs, mask


# --------------------------------------------------------------------------
# Test
# --------------------------------------------------------------------------
if __name__ == "__main__":
    key = jax.random.PRNGKey(0)
    k_vals, k_idx = jax.random.split(key, 2)

    num_nodes = 64
    num_edges = 50000      # NOT a multiple of the tile -> exercises padding;
                           # tiling picker gives 2 grid steps of 224x128 rows.

    vals = jax.random.uniform(k_vals, (num_edges,), dtype=jnp.float32)
    idxs = jax.random.randint(k_idx, (2, num_edges), 0, num_nodes,
                              dtype=jnp.int32)

    keep_rate = 0.7
    seed = 1234

    new_vals, new_idxs, mask = edge_drop(vals, idxs, keep_rate, seed,
                                         resize_val=False)
    jax.block_until_ready((new_vals, new_idxs, mask))

    assert new_vals.shape == (num_edges,) and mask.shape == (num_edges,)
    kept = mask.astype(bool)
    # Dropped entries exactly zero, kept entries unchanged (scale == 1.0).
    assert bool(jnp.all(jnp.where(kept, new_vals == vals, new_vals == 0.0)))
    # Indices pass through untouched.
    assert bool(jnp.all(new_idxs == idxs))
    # Empirical keep fraction close to keep_rate (50k draws, tol ~10 sigma).
    frac = float(jnp.mean(mask.astype(jnp.float32)))
    assert abs(frac - keep_rate) < 0.02, frac

    # resize_val=True with the same seed: identical mask, values scaled.
    new_vals_r, _, mask_r = edge_drop(vals, idxs, keep_rate, seed,
                                      resize_val=True)
    jax.block_until_ready((new_vals_r, mask_r))
    assert bool(jnp.all(mask_r == mask))
    expected_r = jnp.where(kept, vals * (1.0 / keep_rate), 0.0)
    assert bool(jnp.allclose(new_vals_r, expected_r, rtol=1e-6, atol=1e-6))

    # keep_rate == 1.0 short-circuit.
    v1, i1, m1 = edge_drop(vals, idxs, 1.0, seed)
    assert bool(jnp.all(v1 == vals)) and bool(jnp.all(m1 == 1))

    print("KERNEL_OK")
</pallas_src>

<mosaic_0001>
module attributes {stable_mosaic.version = 11 : i64} {
  func.func @_edge_drop_prng_kernel(%arg0: i32, %arg1: memref<1xi32, #tpu.memory_space<smem>>, %arg2: memref<224x128xf32, #tpu.memory_space<vmem>>, %arg3: memref<224x128xf32, #tpu.memory_space<vmem>>, %arg4: memref<224x128xi8, #tpu.memory_space<vmem>>) attributes {dimension_semantics = [#tpu.dimension_semantics<parallel>], iteration_bounds = array<i64: 2>, scalar_prefetch = 1 : i64, scratch_operands = 0 : i64, tpu.core_type = #tpu.core_type<tc>, window_params = [{transform_indices = @transform_0, window_bounds = array<i64: 224, 128>}, {transform_indices = @transform_1, window_bounds = array<i64: 224, 128>}, {transform_indices = @transform_2, window_bounds = array<i64: 224, 128>}]} {
    %c0 = arith.constant 0 : index
    %0 = memref.load %arg1[%c0] : memref<1xi32, #tpu.memory_space<smem>>
    %1 = arith.addi %0, %arg0 : i32
    "tpu.prng_set_seed_32"(%1) : (i32) -> ()
    %2 = "tpu.prng_random_bits"() : () -> vector<224x128xi32>
    %c-858993459_i32 = arith.constant -858993459 : i32
    %3 = vector.broadcast %c-858993459_i32 : i32 to vector<224x128xi32>
    %4 = arith.cmpi sge, %2, %3 : vector<224x128xi32>
    %c0_0 = arith.constant 0 : index
    %c0_1 = arith.constant 0 : index
    %5 = vector.load %arg2[%c0_0, %c0_1] : memref<224x128xf32, #tpu.memory_space<vmem>>, vector<224x128xf32>
    %cst = arith.constant 1.000000e+00 : f32
    %6 = vector.broadcast %cst : f32 to vector<224x128xf32>
    %7 = arith.mulf %5, %6 : vector<224x128xf32>
    %cst_2 = arith.constant 0.000000e+00 : f32
    %8 = vector.broadcast %cst_2 : f32 to vector<224x128xf32>
    %9 = arith.select %4, %7, %8 : vector<224x128xi1>, vector<224x128xf32>
    %c0_3 = arith.constant 0 : index
    %c0_4 = arith.constant 0 : index
    %10 = vector.load %arg3[%c0_3, %c0_4] : memref<224x128xf32, #tpu.memory_space<vmem>>, vector<224x128xf32>
    tpu.vector_store %arg3[%c0_3, %c0_4], %9 {strides = array<i32>} : memref<224x128xf32, #tpu.memory_space<vmem>>, vector<224x128xf32>,
    %11 = arith.extui %4 : vector<224x128xi1> to vector<224x128xi8>
    %c0_5 = arith.constant 0 : index
    %c0_6 = arith.constant 0 : index
    %12 = vector.load %arg4[%c0_5, %c0_6] : memref<224x128xi8, #tpu.memory_space<vmem>>, vector<224x128xi8>
    tpu.vector_store %arg4[%c0_5, %c0_6], %11 {strides = array<i32>} : memref<224x128xi8, #tpu.memory_space<vmem>>, vector<224x128xi8>,
    return
  }
  func.func @transform_0(%arg0: i32, %arg1: memref<1xi32, #tpu.memory_space<smem>>) -> (i32, i32) {
    %c0_i32 = arith.constant 0 : i32
    %c0_i32_0 = arith.constant 0 : i32
    return %arg0, %c0_i32 : i32, i32
  }
  func.func @transform_1(%arg0: i32, %arg1: memref<1xi32, #tpu.memory_space<smem>>) -> (i32, i32) {
    %c0_i32 = arith.constant 0 : i32
    %c0_i32_0 = arith.constant 0 : i32
    return %arg0, %c0_i32 : i32, i32
  }
  func.func @transform_2(%arg0: i32, %arg1: memref<1xi32, #tpu.memory_space<smem>>) -> (i32, i32) {
    %c0_i32 = arith.constant 0 : i32
    %c0_i32_0 = arith.constant 0 : i32
    return %arg0, %c0_i32 : i32, i32
  }
}

module attributes {stable_mosaic.version = 11 : i64} {
  func.func @_edge_drop_bits16_kernel(%arg0: i32, %arg1: memref<224x128xi16, #tpu.memory_space<vmem>>, %arg2: memref<224x128xf32, #tpu.memory_space<vmem>>, %arg3: memref<224x128xf32, #tpu.memory_space<vmem>>, %arg4: memref<224x128xi8, #tpu.memory_space<vmem>>) attributes {dimension_semantics = [#tpu.dimension_semantics<parallel>], iteration_bounds = array<i64: 2>, scalar_prefetch = 0 : i64, scratch_operands = 0 : i64, tpu.core_type = #tpu.core_type<tc>, window_params = [{transform_indices = @transform_0, window_bounds = array<i64: 224, 128>}, {transform_indices = @transform_1, window_bounds = array<i64: 224, 128>}, {transform_indices = @transform_2, window_bounds = array<i64: 224, 128>}, {transform_indices = @transform_3, window_bounds = array<i64: 224, 128>}]} {
    %c0 = arith.constant 0 : index
    %c0_0 = arith.constant 0 : index
    %0 = vector.load %arg1[%c0, %c0_0] : memref<224x128xi16, #tpu.memory_space<vmem>>, vector<224x128xi16>
    %c-13107_i16 = arith.constant -13107 : i16
    %1 = vector.broadcast %c-13107_i16 : i16 to vector<224x128xi16>
    %2 = arith.cmpi sge, %0, %1 : vector<224x128xi16>
    %c0_1 = arith.constant 0 : index
    %c0_2 = arith.constant 0 : index
    %3 = vector.load %arg2[%c0_1, %c0_2] : memref<224x128xf32, #tpu.memory_space<vmem>>, vector<224x128xf32>
    %cst = arith.constant 1.000000e+00 : f32
    %4 = vector.broadcast %cst : f32 to vector<224x128xf32>
    %5 = arith.mulf %3, %4 : vector<224x128xf32>
    %cst_3 = arith.constant 0.000000e+00 : f32
    %6 = vector.broadcast %cst_3 : f32 to vector<224x128xf32>
    %7 = arith.select %2, %5, %6 : vector<224x128xi1>, vector<224x128xf32>
    %c0_4 = arith.constant 0 : index
    %c0_5 = arith.constant 0 : index
    %8 = vector.load %arg3[%c0_4, %c0_5] : memref<224x128xf32, #tpu.memory_space<vmem>>, vector<224x128xf32>
    tpu.vector_store %arg3[%c0_4, %c0_5], %7 {strides = array<i32>} : memref<224x128xf32, #tpu.memory_space<vmem>>, vector<224x128xf32>,
    %9 = arith.extui %2 : vector<224x128xi1> to vector<224x128xi8>
    %c0_6 = arith.constant 0 : index
    %c0_7 = arith.constant 0 : index
    %10 = vector.load %arg4[%c0_6, %c0_7] : memref<224x128xi8, #tpu.memory_space<vmem>>, vector<224x128xi8>
    tpu.vector_store %arg4[%c0_6, %c0_7], %9 {strides = array<i32>} : memref<224x128xi8, #tpu.memory_space<vmem>>, vector<224x128xi8>,
    return
  }
  func.func @transform_0(%arg0: i32) -> (i32, i32) {
    %c0_i32 = arith.constant 0 : i32
    %c0_i32_0 = arith.constant 0 : i32
    return %arg0, %c0_i32 : i32, i32
  }
  func.func @transform_1(%arg0: i32) -> (i32, i32) {
    %c0_i32 = arith.constant 0 : i32
    %c0_i32_0 = arith.constant 0 : i32
    return %arg0, %c0_i32 : i32, i32
  }
  func.func @transform_2(%arg0: i32) -> (i32, i32) {
    %c0_i32 = arith.constant 0 : i32
    %c0_i32_0 = arith.constant 0 : i32
    return %arg0, %c0_i32 : i32, i32
  }
  func.func @transform_3(%arg0: i32) -> (i32, i32) {
    %c0_i32 = arith.constant 0 : i32
    %c0_i32_0 = arith.constant 0 : i32
    return %arg0, %c0_i32 : i32, i32
  }
}

</mosaic_0001>

<llo_original>
// kernel: tpu_custom_call.1
$region0: #{tpu_custom_call.1}
  #allocation0 [shape = 'u32[]', space=smem, size = 0x4, offset = 0x4, fixed_abs, tag = 'smem constant byte address 0x4 - core index']
  #allocation1 [shape = 'u32[72,128]{1,0:T(1,128)}', space=vmem, size = 0x9000, scoped, tag = 'internal scratch']
  #allocation2 [shape = 's32[1]{0}', space=sflag, size = 0x4, scoped, tag = 'scoped memory for tpu_custom_call.1']
  #allocation3 [shape = 's32[1]{0:T(128)S(6)}', space=smem, size = 0x200, scoped, tag = 'prefetched SMEM operand 0']
  %s0 = inlined_call_operand.<no memory space> [shape: s32[1], index: 0, kind: input, shape index: {}]
  %s1 = inlined_call_operand.hbm [shape: f32[448,128], index: 1, kind: input, shape index: {}]
  %s2 = inlined_call_operand.hbm [shape: f32[448,128], index: 2, kind: output, shape index: {0}]
  %s3 = inlined_call_operand.hbm [shape: s8[448,128], index: 3, kind: output, shape index: {1}]
  %4 = xla_tuple %s2, %s3
  %s5 = sld [smem:[#allocation0]]
  $region49: #{tpu_custom_call.1} parent=0
    _
  %s7 = ssub.s32 1, %s5
  %s8 = scalar_select 0, %s7, %s5
  %9 = sst [smem:[#allocation3]] %s0
  $region1: #{tpu_custom_call.1} parent=0
    #allocation4 [shape = 'u8[229376]{0}', space=vmem, size = 0x38000, scoped, tag = 'input window, operand 1']
    #allocation5 [shape = 's32[2]{0}', space=sflag, size = 0x8, scoped, tag = 'scoped memory for tpu_custom_call.1']
    #allocation6 [shape = 's32[2]{0}', space=sflag, size = 0x8, scoped, tag = 'scoped memory for tpu_custom_call.1']
    #allocation7 [shape = 'u8[229376]{0}', space=vmem, size = 0x38000, scoped, tag = 'output window, operand 0']
    #allocation8 [shape = 'u8[57344]{0}', space=vmem, size = 0xe000, scoped, tag = 'output window, operand 1']
    #allocation9 [shape = 's32[2]{0}', space=sflag, size = 0x8, scoped, tag = 'scoped memory for tpu_custom_call.1']
    %10 = vsyncpa [#allocation5], 0
    %s11 = scalar_lea.sflag [#allocation5], 1
    %12 = vsyncpa %s11, 0
    %13 = vsyncpa [#allocation6], 0
    %s14 = scalar_lea.sflag [#allocation6], 1
    %15 = vsyncpa %s14, 0
    %16 = vsyncpa [#allocation9], 0
    %s17 = scalar_lea.sflag [#allocation9], 1
    %18 = vsyncpa %s17, 0
    loop: start=0, step=1, limit=4
    $region2: #{tpu_custom_call.1} parent=1 // loop_pre_header
      _
    $region3: #{tpu_custom_call.1} parent=1 // loop_header
      %s20 = sphi 0, %s24
      %p21 = scmp.ge.s32.totalorder %s20, 4
      %s30 = sphi 0, %s32
      %s33 = sphi 0, %s30
      %s34 = sphi 0, %s33
      %s50 = sphi 0, %s34
      %s56 = sphi 0, %s58
      %s59 = sphi 0, %s56
      %s60 = sphi 0, %s59
      %s76 = sphi 0, %s60
      %s82 = sphi 0, %s84
      %s85 = sphi 0, %s82
      %s86 = sphi 0, %s85
      %s102 = sphi 0, %s86
    $region4: #{tpu_custom_call.1} parent=1 // loop_header_branch
      %23 = sbr.rel (%p21) target = $region8
    $region5: #{tpu_custom_call.1} parent=1 // loop_body
      %s25 = ssub.s32 %s20, 1
      %s26 = ssub.s32 %s20, 2
      %s27 = sadd.s32 %s20, 1
      %s28 = ssub.s32 %s20, %s27
      %p29 = scmp.eq.s32.totalorder %s28, 0
      %s31 = sadd.s32 %s30, 1
      %s32 = scalar_select %p29, %s30, %s31
      %p35 = pneg %p29
      %p36 = scmp.eq.s32.totalorder %s20, 1
      %p37 = por %p35, %p36
      %p38 = scmp.ne.s32.totalorder %s30, %s33
      %p39 = scmp.eq.s32.totalorder %s20, 0
      %p40 = por %p38, %p39
      %p41 = scmp.ne.s32.totalorder %s30, %s33
      %p42 = scmp.eq.s32.totalorder %s25, 1
      %p43 = por %p41, %p42
      %p44 = scmp.ne.s32.totalorder %s33, %s34
      %p45 = scmp.eq.s32.totalorder %s25, 0
      %p46 = por %p44, %p45
      %p47 = scmp.ne.s32.totalorder %s33, %s34
      %p48 = scmp.eq.s32.totalorder %s26, 1
      %p49 = por %p47, %p48
      %p51 = scmp.ne.s32.totalorder %s34, %s50
      %p52 = scmp.eq.s32.totalorder %s26, 0
      %p53 = por %p51, %p52
      %s54 = ssub.s32 %s20, %s27
      %p55 = scmp.eq.s32.totalorder %s54, 0
      %s57 = sadd.s32 %s56, 1
      %s58 = scalar_select %p55, %s56, %s57
      %p61 = pneg %p55
      %p62 = scmp.eq.s32.totalorder %s20, 1
      %p63 = por %p61, %p62
      %p64 = scmp.ne.s32.totalorder %s56, %s59
      %p65 = scmp.eq.s32.totalorder %s20, 0
      %p66 = por %p64, %p65
      %p67 = scmp.ne.s32.totalorder %s56, %s59
      %p68 = scmp.eq.s32.totalorder %s25, 1
      %p69 = por %p67, %p68
      %p70 = scmp.ne.s32.totalorder %s59, %s60
      %p71 = scmp.eq.s32.totalorder %s25, 0
      %p72 = por %p70, %p71
      %p73 = scmp.ne.s32.totalorder %s59, %s60
      %p74 = scmp.eq.s32.totalorder %s26, 1
      %p75 = por %p73, %p74
      %p77 = scmp.ne.s32.totalorder %s60, %s76
      %p78 = scmp.eq.s32.totalorder %s26, 0
      %p79 = por %p77, %p78
      %s80 = ssub.s32 %s20, %s27
      %p81 = scmp.eq.s32.totalorder %s80, 0
      %s83 = sadd.s32 %s82, 1
      %s84 = scalar_select %p81, %s82, %s83
      %p87 = pneg %p81
      %p88 = scmp.eq.s32.totalorder %s20, 1
      %p89 = por %p87, %p88
      %p90 = scmp.ne.s32.totalorder %s82, %s85
      %p91 = scmp.eq.s32.totalorder %s20, 0
      %p92 = por %p90, %p91
      %p93 = scmp.ne.s32.totalorder %s82, %s85
      %p94 = scmp.eq.s32.totalorder %s25, 1
      %p95 = por %p93, %p94
      %p96 = scmp.ne.s32.totalorder %s85, %s86
      %p97 = scmp.eq.s32.totalorder %s25, 0
      %p98 = por %p96, %p97
      %p99 = scmp.ne.s32.totalorder %s85, %s86
      %p100 = scmp.eq.s32.totalorder %s26, 1
      %p101 = por %p99, %p100
      %p103 = scmp.ne.s32.totalorder %s86, %s102
      %p104 = scmp.eq.s32.totalorder %s26, 0
      %p105 = por %p103, %p104
      %p106 = scmp.le.s32.totalorder 1, %s20
      %p107 = scmp.lt.s32.totalorder %s20, 3
      %p108 = pnand %p106, %p107
      %p109 = pneg %p108
      // Predicated region
      $region9: #{tpu_custom_call.1} parent=5 // pred_check
        _
      $region10: #{tpu_custom_call.1} parent=5 // pred_check_branch
        %111 = sbr.rel (%p108) target = $region12
      $region11: #{tpu_custom_call.1} parent=5 // pred_region
        %s112 = ssub.s32 %s20, 1
      $region12: #{tpu_custom_call.1} parent=5 // pred_fallthru
        _
      %p113 = scmp.lt.s32.totalorder %s20, 2
      // Predicated region
      $region13: #{tpu_custom_call.1} parent=5 // pred_check
        %p114 = pneg %p113
      $region14: #{tpu_custom_call.1} parent=5 // pred_check_branch
        %116 = sbr.rel (%p114) target = $region16
      $region15: #{tpu_custom_call.1} parent=5 // pred_region
        // Predicated region
        $region17: #{tpu_custom_call.1} parent=15 // pred_check
          %p117 = pneg %p40
        $region18: #{tpu_custom_call.1} parent=15 // pred_check_branch
          %119 = sbr.rel (%p117) target = $region20
        $region19: #{tpu_custom_call.1} parent=15 // pred_region
          %s120 = sand.u32 %s30, 1
          %s121 = scalar_lea.sflag [#allocation5], %s120
          %s122 = sand.u32 %s30, 1
          %s123 = smul.addr %s122, 224
          %s124 = scalar_lea.vmem [#allocation4], %s123
          %s125 = smul.u32 28, %s20
          %127 = vsyncadd %s121, 0
          %s128 = smul.addr %s125, 8
          %s129 = scalar_lea.hbm %s1, %s128
          %s130 = sshll.u32 %s129, 4
          %s131 = int_to_ptr.hbm [resolvable:$true] %s130
          %s132 = sshll.u32 %s124, 4
          %s133 = int_to_ptr.vmem [resolvable:$true] %s132
          %138 = dma.hbm_to_vmem [thread:$0]  %s131, 3584, %s133, %s121, 128, 128, 8
        $region20: #{tpu_custom_call.1} parent=15 // pred_fallthru
          _
      $region16: #{tpu_custom_call.1} parent=5 // pred_fallthru
        _
      %p139 = scmp.le.s32.totalorder 1, %s20
      %p140 = scmp.lt.s32.totalorder %s20, 3
      %p141 = pnand %p139, %p140
      %p142 = pneg %p141
      // Predicated region
      $region21: #{tpu_custom_call.1} parent=5 // pred_check
        _
      $region22: #{tpu_custom_call.1} parent=5 // pred_check_branch
        %144 = sbr.rel (%p141) target = $region24
      $region23: #{tpu_custom_call.1} parent=5 // pred_region
        %s145 = ssub.s32 %s20, 1
        %s146 = sand.u32 %s33, 1
        %s147 = scalar_lea.sflag [#allocation5], %s146
        %s148 = sand.u32 %s33, 1
        %s149 = smul.addr %s148, 224
        %s150 = scalar_lea.vmem [#allocation4], %s149
        // Predicated region
        $region25: #{tpu_custom_call.1} parent=23 // pred_check
          %p151 = pneg %p46
        $region26: #{tpu_custom_call.1} parent=23 // pred_check_branch
          %153 = sbr.rel (%p151) target = $region28
        $region27: #{tpu_custom_call.1} parent=23 // pred_region
          %155 = dma.done %s147, 3584
        $region28: #{tpu_custom_call.1} parent=23 // pred_fallthru
          _
        %s156 = sand.u32 %s33, 1
        %s157 = scalar_lea.sflag [#allocation5], %s156
        %s158 = sand.u32 %s33, 1
        %s159 = smul.addr %s158, 224
        %s160 = scalar_lea.vmem [#allocation4], %s159
        %p161 = pneg %p46
        %p162 = pneg %p43
        %p163 = pneg %p72
        %p164 = pneg %p69
        %s165 = sand.u32 %s59, 1
        %s166 = scalar_lea.sflag [#allocation6], %s165
        %s167 = sand.u32 %s59, 1
        %s168 = smul.addr %s167, 224
        %s169 = scalar_lea.vmem [#allocation7], %s168
        %p170 = pneg %p98
        %p171 = pneg %p95
        %s172 = sand.u32 %s85, 1
        %s173 = scalar_lea.sflag [#allocation9], %s172
        %s174 = sand.u32 %s85, 1
        %s175 = smul.addr %s174, 56
        %s176 = scalar_lea.vmem [#allocation8], %s175
        %s177 = smul.u32 28, %s25
        %s178 = smul.u32 28, %s25
        %s179 = smul.u32 7, %s25
        %s182 = sld [smem:[#allocation3]]
        %s183 = sadd.s32 %s182, %s25
        %v184 = vlaneseq
        %v185 = vstv %s183
        %v186 = vxor.u32 %v185, %v185
        %v187 = vxor.u32 %v186, 466688986
        %v188 = vadd.s32 %v184, %v185
        %v189 = vadd.s32 %v188, %v188
        %v190 = vshll.u32 %v188, 13
        %v191 = vshrl.u32 %v188, 19
        %v192 = vor.u32 %v190, %v191
        %v193 = vxor.u32 %v189, %v192
        %v194 = vadd.s32 %v189, %v193
        %v195 = vshll.u32 %v193, 15
        %v196 = vshrl.u32 %v193, 17
        %v197 = vor.u32 %v195, %v196
        %v198 = vxor.u32 %v194, %v197
        %v199 = vadd.s32 %v194, %v198
        %v200 = vshll.u32 %v198, 26
        %v201 = vshrl.u32 %v198, 6
        %v202 = vor.u32 %v200, %v201
        %v203 = vxor.u32 %v199, %v202
        %v204 = vadd.s32 %v199, %v203
        %v205 = vshll.u32 %v203, 6
        %v206 = vshrl.u32 %v203, 26
        %v207 = vor.u32 %v205, %v206
        %v208 = vxor.u32 %v204, %v207
        %v209 = vadd.s32 %v204, %v185
        %v210 = vadd.s32 %v208, %v187
        %v211 = vadd.s32 %v210, 1
        %v212 = vadd.s32 %v209, %v211
        %v213 = vshll.u32 %v211, 17
        %v214 = vshrl.u32 %v211, 15
        %v215 = vor.u32 %v213, %v214
        %v216 = vxor.u32 %v212, %v215
        %v217 = vadd.s32 %v212, %v216
        %v218 = vshll.u32 %v216, 29
        %v219 = vshrl.u32 %v216, 3
        %v220 = vor.u32 %v218, %v219
        %v221 = vxor.u32 %v217, %v220
        %v222 = vadd.s32 %v217, %v221
        %v223 = vshll.u32 %v221, 16
        %v224 = vshrl.u32 %v221, 16
        %v225 = vor.u32 %v223, %v224
        %v226 = vxor.u32 %v222, %v225
        %v227 = vadd.s32 %v222, %v226
        %v228 = vshll.u32 %v226, 24
        %v229 = vshrl.u32 %v226, 8
        %v230 = vor.u32 %v228, %v229
        %v231 = vxor.u32 %v227, %v230
        %v232 = vadd.s32 %v227, %v187
        %v233 = vadd.s32 %v231, %v185
        %v234 = vadd.s32 %v233, 2
        %v235 = vadd.s32 %v232, %v234
        %v236 = vshll.u32 %v234, 13
        %v237 = vshrl.u32 %v234, 19
        %v238 = vor.u32 %v236, %v237
        %v239 = vxor.u32 %v235, %v238
        %v240 = vadd.s32 %v235, %v239
        %v241 = vshll.u32 %v239, 15
        %v242 = vshrl.u32 %v239, 17
        %v243 = vor.u32 %v241, %v242
        %v244 = vxor.u32 %v240, %v243
        %v245 = vadd.s32 %v240, %v244
        %v246 = vshll.u32 %v244, 26
        %v247 = vshrl.u32 %v244, 6
        %v248 = vor.u32 %v246, %v247
        %v249 = vxor.u32 %v245, %v248
        %v250 = vadd.s32 %v245, %v249
        %v251 = vshll.u32 %v249, 6
        %v252 = vshrl.u32 %v249, 26
        %v253 = vor.u32 %v251, %v252
        %v254 = vxor.u32 %v250, %v253
        %v255 = vadd.s32 %v250, %v185
        %v256 = vadd.s32 %v254, %v185
        %v257 = vadd.s32 %v256, 3
        %v258 = vadd.s32 %v255, %v257
        %v259 = vshll.u32 %v257, 17
        %v260 = vshrl.u32 %v257, 15
        %v261 = vor.u32 %v259, %v260
        %v262 = vxor.u32 %v258, %v261
        %v263 = vadd.s32 %v258, %v262
        %v264 = vshll.u32 %v262, 29
        %v265 = vshrl.u32 %v262, 3
        %v266 = vor.u32 %v264, %v265
        %v267 = vxor.u32 %v263, %v266
        %v268 = vadd.s32 %v263, %v267
        %v269 = vshll.u32 %v267, 16
        %v270 = vshrl.u32 %v267, 16
        %v271 = vor.u32 %v269, %v270
        %v272 = vxor.u32 %v268, %v271
        %v273 = vadd.s32 %v268, %v272
        %v274 = vshll.u32 %v272, 24
        %v275 = vshrl.u32 %v272, 8
        %v276 = vor.u32 %v274, %v275
        %v277 = vxor.u32 %v273, %v276
        %v278 = vadd.s32 %v273, %v185
        %v279 = vadd.s32 %v277, %v187
        %v280 = vadd.s32 %v279, 4
        %v281 = vadd.s32 %v278, %v280
        %v282 = vshll.u32 %v280, 13
        %v283 = vshrl.u32 %v280, 19
        %v284 = vor.u32 %v282, %v283
        %v285 = vxor.u32 %v281, %v284
        %v286 = vadd.s32 %v281, %v285
        %v287 = vshll.u32 %v285, 15
        %v288 = vshrl.u32 %v285, 17
        %v289 = vor.u32 %v287, %v288
        %v290 = vxor.u32 %v286, %v289
        %v291 = vadd.s32 %v286, %v290
        %v292 = vshll.u32 %v290, 26
        %v293 = vshrl.u32 %v290, 6
        %v294 = vor.u32 %v292, %v293
        %v295 = vxor.u32 %v291, %v294
        %v296 = vadd.s32 %v291, %v295
        %v297 = vshll.u32 %v295, 6
        %v298 = vshrl.u32 %v295, 26
        %v299 = vor.u32 %v297, %v298
        %v300 = vxor.u32 %v296, %v299
        %v301 = vadd.s32 %v296, %v187
        %v302 = vadd.s32 %v300, %v185
        %v303 = vadd.s32 %v302, 5
        %v304 = vxor.u32 %v301, %v303
        %305 = set.rngseed %v304
        %v306 = vrng
        %v307 = vrng
        %v308 = vrng
        %v309 = vrng
        %v310 = vrng
        %v311 = vrng
        %v312 = vrng
        %v313 = vrng
        %v314 = vrng
        %v315 = vrng
        %v316 = vrng
        %v317 = vrng
        %v318 = vrng
        %v319 = vrng
        %v320 = vrng
        %v321 = vrng
        %v322 = vrng
        %v323 = vrng
        %v324 = vrng
        %v325 = vrng
        %v326 = vrng
        %v327 = vrng
        %v328 = vrng
        %v329 = vrng
        %v330 = vrng
        %v331 = vrng
        %v332 = vrng
        %v333 = vrng
        %vm334 = vcmp.ge.s32.totalorder %v306, 3435973837
        %vm335 = vcmp.ge.s32.totalorder %v307, 3435973837
        %vm336 = vcmp.ge.s32.totalorder %v308, 3435973837
        %vm337 = vcmp.ge.s32.totalorder %v309, 3435973837
        %vm338 = vcmp.ge.s32.totalorder %v310, 3435973837
        %vm339 = vcmp.ge.s32.totalorder %v311, 3435973837
        %vm340 = vcmp.ge.s32.totalorder %v312, 3435973837
        %vm341 = vcmp.ge.s32.totalorder %v313, 3435973837
        %vm342 = vcmp.ge.s32.totalorder %v314, 3435973837
        %vm343 = vcmp.ge.s32.totalorder %v315, 3435973837
        %vm344 = vcmp.ge.s32.totalorder %v316, 3435973837
        %vm345 = vcmp.ge.s32.totalorder %v317, 3435973837
        %vm346 = vcmp.ge.s32.totalorder %v318, 3435973837
        %vm347 = vcmp.ge.s32.totalorder %v319, 3435973837
        %vm348 = vcmp.ge.s32.totalorder %v320, 3435973837
        %vm349 = vcmp.ge.s32.totalorder %v321, 3435973837
        %vm350 = vcmp.ge.s32.totalorder %v322, 3435973837
        %vm351 = vcmp.ge.s32.totalorder %v323, 3435973837
        %vm352 = vcmp.ge.s32.totalorder %v324, 3435973837
        %vm353 = vcmp.ge.s32.totalorder %v325, 3435973837
        %vm354 = vcmp.ge.s32.totalorder %v326, 3435973837
        %vm355 = vcmp.ge.s32.totalorder %v327, 3435973837
        %vm356 = vcmp.ge.s32.totalorder %v328, 3435973837
        %vm357 = vcmp.ge.s32.totalorder %v329, 3435973837
        %vm358 = vcmp.ge.s32.totalorder %v330, 3435973837
        %vm359 = vcmp.ge.s32.totalorder %v331, 3435973837
        %vm360 = vcmp.ge.s32.totalorder %v332, 3435973837
        %vm361 = vcmp.ge.s32.totalorder %v333, 3435973837
        %v362 = vld [vmem:[%s150] sm:$0xff]
        %v363 = vld [vmem:[%s150 + $0x8] sm:$0xff]
        %v364 = vld [vmem:[%s150 + $0x10] sm:$0xff]
        %v365 = vld [vmem:[%s150 + $0x18] sm:$0xff]
        %v366 = vld [vmem:[%s150 + $0x20] sm:$0xff]
        %v367 = vld [vmem:[%s150 + $0x28] sm:$0xff]
        %v368 = vld [vmem:[%s150 + $0x30] sm:$0xff]
        %v369 = vld [vmem:[%s150 + $0x38] sm:$0xff]
        %v370 = vld [vmem:[%s150 + $0x40] sm:$0xff]
        %v371 = vld [vmem:[%s150 + $0x48] sm:$0xff]
        %v372 = vld [vmem:[%s150 + $0x50] sm:$0xff]
        %v373 = vld [vmem:[%s150 + $0x58] sm:$0xff]
        %v374 = vld [vmem:[%s150 + $0x60] sm:$0xff]
        %v375 = vld [vmem:[%s150 + $0x68] sm:$0xff]
        %v376 = vld [vmem:[%s150 + $0x70] sm:$0xff]
        %v377 = vld [vmem:[%s150 + $0x78] sm:$0xff]
        %v378 = vld [vmem:[%s150 + $0x80] sm:$0xff]
        %v379 = vld [vmem:[%s150 + $0x88] sm:$0xff]
        %v380 = vld [vmem:[%s150 + $0x90] sm:$0xff]
        %v381 = vld [vmem:[%s150 + $0x98] sm:$0xff]
        %v382 = vld [vmem:[%s150 + $0xa0] sm:$0xff]
        %v383 = vld [vmem:[%s150 + $0xa8] sm:$0xff]
        %v384 = vld [vmem:[%s150 + $0xb0] sm:$0xff]
        %v385 = vld [vmem:[%s150 + $0xb8] sm:$0xff]
        %v386 = vld [vmem:[%s150 + $0xc0] sm:$0xff]
        %v387 = vld [vmem:[%s150 + $0xc8] sm:$0xff]
        %v388 = vld [vmem:[%s150 + $0xd0] sm:$0xff]
        %v389 = vld [vmem:[%s150 + $0xd8] sm:$0xff]
        %v390 = vsel %vm334, %v362, 0.0
        %v391 = vsel %vm335, %v363, 0.0
        %v392 = vsel %vm336, %v364, 0.0
        %v393 = vsel %vm337, %v365, 0.0
        %v394 = vsel %vm338, %v366, 0.0
        %v395 = vsel %vm339, %v367, 0.0
        %v396 = vsel %vm340, %v368, 0.0
        %v397 = vsel %vm341, %v369, 0.0
        %v398 = vsel %vm342, %v370, 0.0
        %v399 = vsel %vm343, %v371, 0.0
        %v400 = vsel %vm344, %v372, 0.0
        %v401 = vsel %vm345, %v373, 0.0
        %v402 = vsel %vm346, %v374, 0.0
        %v403 = vsel %vm347, %v375, 0.0
        %v404 = vsel %vm348, %v376, 0.0
        %v405 = vsel %vm349, %v377, 0.0
        %v406 = vsel %vm350, %v378, 0.0
        %v407 = vsel %vm351, %v379, 0.0
        %v408 = vsel %vm352, %v380, 0.0
        %v409 = vsel %vm353, %v381, 0.0
        %v410 = vsel %vm354, %v382, 0.0
        %v411 = vsel %vm355, %v383, 0.0
        %v412 = vsel %vm356, %v384, 0.0
        %v413 = vsel %vm357, %v385, 0.0
        %v414 = vsel %vm358, %v386, 0.0
        %v415 = vsel %vm359, %v387, 0.0
        %v416 = vsel %vm360, %v388, 0.0
        %v417 = vsel %vm361, %v389, 0.0
        %418 = vst [vmem:[%s169] sm:$0xff] %v390
        %419 = vst [vmem:[%s169 + $0x8] sm:$0xff] %v391
        %420 = vst [vmem:[%s169 + $0x10] sm:$0xff] %v392
        %421 = vst [vmem:[%s169 + $0x18] sm:$0xff] %v393
        %422 = vst [vmem:[%s169 + $0x20] sm:$0xff] %v394
        %423 = vst [vmem:[%s169 + $0x28] sm:$0xff] %v395
        %424 = vst [vmem:[%s169 + $0x30] sm:$0xff] %v396
        %425 = vst [vmem:[%s169 + $0x38] sm:$0xff] %v397
        %426 = vst [vmem:[%s169 + $0x40] sm:$0xff] %v398
        %427 = vst [vmem:[%s169 + $0x48] sm:$0xff] %v399
        %428 = vst [vmem:[%s169 + $0x50] sm:$0xff] %v400
        %429 = vst [vmem:[%s169 + $0x58] sm:$0xff] %v401
        %430 = vst [vmem:[%s169 + $0x60] sm:$0xff] %v402
        %431 = vst [vmem:[%s169 + $0x68] sm:$0xff] %v403
        %432 = vst [vmem:[%s169 + $0x70] sm:$0xff] %v404
        %433 = vst [vmem:[%s169 + $0x78] sm:$0xff] %v405
        %434 = vst [vmem:[%s169 + $0x80] sm:$0xff] %v406
        %435 = vst [vmem:[%s169 + $0x88] sm:$0xff] %v407
        %436 = vst [vmem:[%s169 + $0x90] sm:$0xff] %v408
        %437 = vst [vmem:[%s169 + $0x98] sm:$0xff] %v409
        %438 = vst [vmem:[%s169 + $0xa0] sm:$0xff] %v410
        %439 = vst [vmem:[%s169 + $0xa8] sm:$0xff] %v411
        %440 = vst [vmem:[%s169 + $0xb0] sm:$0xff] %v412
        %441 = vst [vmem:[%s169 + $0xb8] sm:$0xff] %v413
        %442 = vst [vmem:[%s169 + $0xc0] sm:$0xff] %v414
        %443 = vst [vmem:[%s169 + $0xc8] sm:$0xff] %v415
        %444 = vst [vmem:[%s169 + $0xd0] sm:$0xff] %v416
        %445 = vst [vmem:[%s169 + $0xd8] sm:$0xff] %v417
        %vm446 = vmpackc.low %vm335, %vm334
        %vm447 = vmpackc.low %vm337, %vm336
        %v448 = vsel %vm446, 16711935, 0
        %v449 = vsel %vm447, 16711935, 0
        %v450 = vpack.c.b8 %v449, %v448
        %vm451 = vnez %v450
        %vm452 = vmpackc.low %vm339, %vm338
        %vm453 = vmpackc.low %vm341, %vm340
        %v454 = vsel %vm452, 16711935, 0
        %v455 = vsel %vm453, 16711935, 0
        %v456 = vpack.c.b8 %v455, %v454
        %vm457 = vnez %v456
        %vm458 = vmpackc.low %vm343, %vm342
        %vm459 = vmpackc.low %vm345, %vm344
        %v460 = vsel %vm458, 16711935, 0
        %v461 = vsel %vm459, 16711935, 0
        %v462 = vpack.c.b8 %v461, %v460
        %vm463 = vnez %v462
        %vm464 = vmpackc.low %vm347, %vm346
        %vm465 = vmpackc.low %vm349, %vm348
        %v466 = vsel %vm464, 16711935, 0
        %v467 = vsel %vm465, 16711935, 0
        %v468 = vpack.c.b8 %v467, %v466
        %vm469 = vnez %v468
        %vm470 = vmpackc.low %vm351, %vm350
        %vm471 = vmpackc.low %vm353, %vm352
        %v472 = vsel %vm470, 16711935, 0
        %v473 = vsel %vm471, 16711935, 0
        %v474 = vpack.c.b8 %v473, %v472
        %vm475 = vnez %v474
        %vm476 = vmpackc.low %vm355, %vm354
        %vm477 = vmpackc.low %vm357, %vm356
        %v478 = vsel %vm476, 16711935, 0
        %v479 = vsel %vm477, 16711935, 0
        %v480 = vpack.c.b8 %v479, %v478
        %vm481 = vnez %v480
        %vm482 = vmpackc.low %vm359, %vm358
        %vm483 = vmpackc.low %vm361, %vm360
        %v484 = vsel %vm482, 16711935, 0
        %v485 = vsel %vm483, 16711935, 0
        %v486 = vpack.c.b8 %v485, %v484
        %vm487 = vnez %v486
        %v488 = vsel %vm451, 16843009, 0
        %v489 = vsel %vm457, 16843009, 0
        %v490 = vsel %vm463, 16843009, 0
        %v491 = vsel %vm469, 16843009, 0
        %v492 = vsel %vm475, 16843009, 0
        %v493 = vsel %vm481, 16843009, 0
        %v494 = vsel %vm487, 16843009, 0
        %495 = vst [vmem:[%s176] sm:$0xff] %v488
        %496 = vst [vmem:[%s176 + $0x8] sm:$0xff] %v489
        %497 = vst [vmem:[%s176 + $0x10] sm:$0xff] %v490
        %498 = vst [vmem:[%s176 + $0x18] sm:$0xff] %v491
        %499 = vst [vmem:[%s176 + $0x20] sm:$0xff] %v492
        %500 = vst [vmem:[%s176 + $0x28] sm:$0xff] %v493
        %501 = vst [vmem:[%s176 + $0x30] sm:$0xff] %v494
        %s502 = sand.u32 %s59, 1
        %s503 = scalar_lea.sflag [#allocation6], %s502
        %s504 = sand.u32 %s59, 1
        %s505 = smul.addr %s504, 224
        %s506 = scalar_lea.vmem [#allocation7], %s505
        %s507 = sand.u32 %s85, 1
        %s508 = scalar_lea.sflag [#allocation9], %s507
        %s509 = sand.u32 %s85, 1
        %s510 = smul.addr %s509, 56
        %s511 = scalar_lea.vmem [#allocation8], %s510
        // Predicated region
        $region29: #{tpu_custom_call.1} parent=23 // pred_check
          %p512 = pneg %p69
        $region30: #{tpu_custom_call.1} parent=23 // pred_check_branch
          %514 = sbr.rel (%p512) target = $region32
        $region31: #{tpu_custom_call.1} parent=23 // pred_region
          %s515 = smul.u32 28, %s25
          %517 = vsyncadd %s503, 0
          %s518 = smul.addr %s515, 8
          %s519 = scalar_lea.hbm %s2, %s518
          %s520 = sshll.u32 %s506, 4
          %s521 = int_to_ptr.vmem [resolvable:$true] %s520
          %s522 = sshll.u32 %s519, 4
          %s523 = int_to_ptr.hbm [resolvable:$true] %s522
          %528 = dma.vmem_to_hbm [thread:$0]  %s521, 3584, %s523, %s503, 128, 128, 8
        $region32: #{tpu_custom_call.1} parent=23 // pred_fallthru
          _
        // Predicated region
        $region33: #{tpu_custom_call.1} parent=23 // pred_check
          %p529 = pneg %p95
        $region34: #{tpu_custom_call.1} parent=23 // pred_check_branch
          %531 = sbr.rel (%p529) target = $region36
        $region35: #{tpu_custom_call.1} parent=23 // pred_region
          %s532 = smul.u32 7, %s25
          %534 = vsyncadd %s508, 0
          %s535 = smul.addr %s532, 8
          %s536 = scalar_lea.hbm %s3, %s535
          %s537 = sshll.u32 %s511, 4
          %s538 = int_to_ptr.vmem [resolvable:$true] %s537
          %s539 = sshll.u32 %s536, 4
          %s540 = int_to_ptr.hbm [resolvable:$true] %s539
          %545 = dma.vmem_to_hbm [thread:$0]  %s538, 896, %s540, %s508, 128, 128, 8
        $region36: #{tpu_custom_call.1} parent=23 // pred_fallthru
          _
      $region24: #{tpu_custom_call.1} parent=5 // pred_fallthru
        _
      %p546 = scmp.le.s32.totalorder 2, %s20
      // Predicated region
      $region37: #{tpu_custom_call.1} parent=5 // pred_check
        %p547 = pneg %p546
      $region38: #{tpu_custom_call.1} parent=5 // pred_check_branch
        %549 = sbr.rel (%p547) target = $region40
      $region39: #{tpu_custom_call.1} parent=5 // pred_region
        %s550 = ssub.s32 %s20, 2
        // Predicated region
        $region41: #{tpu_custom_call.1} parent=39 // pred_check
          %p551 = pneg %p75
        $region42: #{tpu_custom_call.1} parent=39 // pred_check_branch
          %553 = sbr.rel (%p551) target = $region44
        $region43: #{tpu_custom_call.1} parent=39 // pred_region
          %s554 = sand.u32 %s60, 1
          %s555 = scalar_lea.sflag [#allocation6], %s554
          %s556 = sand.u32 %s60, 1
          %s557 = smul.addr %s556, 224
          %s558 = scalar_lea.vmem [#allocation7], %s557
          %560 = dma.done %s555, 3584
        $region44: #{tpu_custom_call.1} parent=39 // pred_fallthru
          _
        // Predicated region
        $region45: #{tpu_custom_call.1} parent=39 // pred_check
          %p561 = pneg %p101
        $region46: #{tpu_custom_call.1} parent=39 // pred_check_branch
          %563 = sbr.rel (%p561) target = $region48
        $region47: #{tpu_custom_call.1} parent=39 // pred_region
          %s564 = sand.u32 %s86, 1
          %s565 = scalar_lea.sflag [#allocation9], %s564
          %s566 = sand.u32 %s86, 1
          %s567 = smul.addr %s566, 56
          %s568 = scalar_lea.vmem [#allocation8], %s567
          %570 = dma.done %s565, 896
        $region48: #{tpu_custom_call.1} parent=39 // pred_fallthru
          _
      $region40: #{tpu_custom_call.1} parent=5 // pred_fallthru
        _
    $region6: #{tpu_custom_call.1} parent=1 // loop_footer
      %s24 = sadd.s32 1, %s20
    $region7: #{tpu_custom_call.1} parent=1 // loop_footer_branch
      %19 = sbr.rel target = $region3
    $region8: #{tpu_custom_call.1} parent=1 // loop_exit
      _
    %571 = vsyncpa [#allocation5], 1
    %s572 = scalar_lea.sflag [#allocation5], 1
    %573 = vsyncpa %s572, 1
    %574 = vsyncpa [#allocation6], 1
    %s575 = scalar_lea.sflag [#allocation6], 1
    %576 = vsyncpa %s575, 1
    %577 = vsyncpa [#allocation9], 1
    %s578 = scalar_lea.sflag [#allocation9], 1
    %579 = vsyncpa %s578, 1

// kernel: tpu_custom_call.1
$region0: #{tpu_custom_call.1}
  #allocation0 [shape = 'u32[]', space=smem, size = 0x4, offset = 0x4, fixed_abs, tag = 'smem constant byte address 0x4 - core index']
  #allocation1 [shape = 'u32[72,128]{1,0:T(1,128)}', space=vmem, size = 0x9000, scoped, tag = 'internal scratch']
  %s0 = inlined_call_operand.hbm [shape: s16[448,128], index: 0, kind: input, shape index: {}]
  %s1 = inlined_call_operand.hbm [shape: f32[448,128], index: 1, kind: input, shape index: {}]
  %s2 = inlined_call_operand.hbm [shape: f32[448,128], index: 2, kind: output, shape index: {0}]
  %s3 = inlined_call_operand.hbm [shape: s8[448,128], index: 3, kind: output, shape index: {1}]
  %4 = xla_tuple %s2, %s3
  %s5 = sld [smem:[#allocation0]]
  $region57: #{tpu_custom_call.1} parent=0
    _
  %s7 = ssub.s32 1, %s5
  %s8 = scalar_select 0, %s7, %s5
  $region1: #{tpu_custom_call.1} parent=0
    #allocation2 [shape = 'u8[114688]{0}', space=vmem, size = 0x1c000, scoped, tag = 'input window, operand 0']
    #allocation3 [shape = 's32[2]{0}', space=sflag, size = 0x8, scoped, tag = 'scoped memory for tpu_custom_call.1']
    #allocation4 [shape = 's32[2]{0}', space=sflag, size = 0x8, scoped, tag = 'scoped memory for tpu_custom_call.1']
    #allocation5 [shape = 'u8[229376]{0}', space=vmem, size = 0x38000, scoped, tag = 'input window, operand 1']
    #allocation6 [shape = 's32[2]{0}', space=sflag, size = 0x8, scoped, tag = 'scoped memory for tpu_custom_call.1']
    #allocation7 [shape = 'u8[229376]{0}', space=vmem, size = 0x38000, scoped, tag = 'output window, operand 0']
    #allocation8 [shape = 'u8[57344]{0}', space=vmem, size = 0xe000, scoped, tag = 'output window, operand 1']
    #allocation9 [shape = 's32[2]{0}', space=sflag, size = 0x8, scoped, tag = 'scoped memory for tpu_custom_call.1']
    %9 = vsyncpa [#allocation3], 0
    %s10 = scalar_lea.sflag [#allocation3], 1
    %11 = vsyncpa %s10, 0
    %12 = vsyncpa [#allocation6], 0
    %s13 = scalar_lea.sflag [#allocation6], 1
    %14 = vsyncpa %s13, 0
    %15 = vsyncpa [#allocation4], 0
    %s16 = scalar_lea.sflag [#allocation4], 1
    %17 = vsyncpa %s16, 0
    %18 = vsyncpa [#allocation9], 0
    %s19 = scalar_lea.sflag [#allocation9], 1
    %20 = vsyncpa %s19, 0
    loop: start=0, step=1, limit=4
    $region2: #{tpu_custom_call.1} parent=1 // loop_pre_header
      _
    $region3: #{tpu_custom_call.1} parent=1 // loop_header
      %s22 = sphi 0, %s26
      %p23 = scmp.ge.s32.totalorder %s22, 4
      %s32 = sphi 0, %s34
      %s35 = sphi 0, %s32
      %s36 = sphi 0, %s35
      %s52 = sphi 0, %s36
      %s58 = sphi 0, %s60
      %s61 = sphi 0, %s58
      %s62 = sphi 0, %s61
      %s78 = sphi 0, %s62
      %s84 = sphi 0, %s86
      %s87 = sphi 0, %s84
      %s88 = sphi 0, %s87
      %s104 = sphi 0, %s88
      %s110 = sphi 0, %s112
      %s113 = sphi 0, %s110
      %s114 = sphi 0, %s113
      %s130 = sphi 0, %s114
    $region4: #{tpu_custom_call.1} parent=1 // loop_header_branch
      %25 = sbr.rel (%p23) target = $region8
    $region5: #{tpu_custom_call.1} parent=1 // loop_body
      %s27 = ssub.s32 %s22, 1
      %s28 = ssub.s32 %s22, 2
      %s29 = sadd.s32 %s22, 1
      %s30 = ssub.s32 %s22, %s29
      %p31 = scmp.eq.s32.totalorder %s30, 0
      %s33 = sadd.s32 %s32, 1
      %s34 = scalar_select %p31, %s32, %s33
      %p37 = pneg %p31
      %p38 = scmp.eq.s32.totalorder %s22, 1
      %p39 = por %p37, %p38
      %p40 = scmp.ne.s32.totalorder %s32, %s35
      %p41 = scmp.eq.s32.totalorder %s22, 0
      %p42 = por %p40, %p41
      %p43 = scmp.ne.s32.totalorder %s32, %s35
      %p44 = scmp.eq.s32.totalorder %s27, 1
      %p45 = por %p43, %p44
      %p46 = scmp.ne.s32.totalorder %s35, %s36
      %p47 = scmp.eq.s32.totalorder %s27, 0
      %p48 = por %p46, %p47
      %p49 = scmp.ne.s32.totalorder %s35, %s36
      %p50 = scmp.eq.s32.totalorder %s28, 1
      %p51 = por %p49, %p50
      %p53 = scmp.ne.s32.totalorder %s36, %s52
      %p54 = scmp.eq.s32.totalorder %s28, 0
      %p55 = por %p53, %p54
      %s56 = ssub.s32 %s22, %s29
      %p57 = scmp.eq.s32.totalorder %s56, 0
      %s59 = sadd.s32 %s58, 1
      %s60 = scalar_select %p57, %s58, %s59
      %p63 = pneg %p57
      %p64 = scmp.eq.s32.totalorder %s22, 1
      %p65 = por %p63, %p64
      %p66 = scmp.ne.s32.totalorder %s58, %s61
      %p67 = scmp.eq.s32.totalorder %s22, 0
      %p68 = por %p66, %p67
      %p69 = scmp.ne.s32.totalorder %s58, %s61
      %p70 = scmp.eq.s32.totalorder %s27, 1
      %p71 = por %p69, %p70
      %p72 = scmp.ne.s32.totalorder %s61, %s62
      %p73 = scmp.eq.s32.totalorder %s27, 0
      %p74 = por %p72, %p73
      %p75 = scmp.ne.s32.totalorder %s61, %s62
      %p76 = scmp.eq.s32.totalorder %s28, 1
      %p77 = por %p75, %p76
      %p79 = scmp.ne.s32.totalorder %s62, %s78
      %p80 = scmp.eq.s32.totalorder %s28, 0
      %p81 = por %p79, %p80
      %s82 = ssub.s32 %s22, %s29
      %p83 = scmp.eq.s32.totalorder %s82, 0
      %s85 = sadd.s32 %s84, 1
      %s86 = scalar_select %p83, %s84, %s85
      %p89 = pneg %p83
      %p90 = scmp.eq.s32.totalorder %s22, 1
      %p91 = por %p89, %p90
      %p92 = scmp.ne.s32.totalorder %s84, %s87
      %p93 = scmp.eq.s32.totalorder %s22, 0
      %p94 = por %p92, %p93
      %p95 = scmp.ne.s32.totalorder %s84, %s87
      %p96 = scmp.eq.s32.totalorder %s27, 1
      %p97 = por %p95, %p96
      %p98 = scmp.ne.s32.totalorder %s87, %s88
      %p99 = scmp.eq.s32.totalorder %s27, 0
      %p100 = por %p98, %p99
      %p101 = scmp.ne.s32.totalorder %s87, %s88
      %p102 = scmp.eq.s32.totalorder %s28, 1
      %p103 = por %p101, %p102
      %p105 = scmp.ne.s32.totalorder %s88, %s104
      %p106 = scmp.eq.s32.totalorder %s28, 0
      %p107 = por %p105, %p106
      %s108 = ssub.s32 %s22, %s29
      %p109 = scmp.eq.s32.totalorder %s108, 0
      %s111 = sadd.s32 %s110, 1
      %s112 = scalar_select %p109, %s110, %s111
      %p115 = pneg %p109
      %p116 = scmp.eq.s32.totalorder %s22, 1
      %p117 = por %p115, %p116
      %p118 = scmp.ne.s32.totalorder %s110, %s113
      %p119 = scmp.eq.s32.totalorder %s22, 0
      %p120 = por %p118, %p119
      %p121 = scmp.ne.s32.totalorder %s110, %s113
      %p122 = scmp.eq.s32.totalorder %s27, 1
      %p123 = por %p121, %p122
      %p124 = scmp.ne.s32.totalorder %s113, %s114
      %p125 = scmp.eq.s32.totalorder %s27, 0
      %p126 = por %p124, %p125
      %p127 = scmp.ne.s32.totalorder %s113, %s114
      %p128 = scmp.eq.s32.totalorder %s28, 1
      %p129 = por %p127, %p128
      %p131 = scmp.ne.s32.totalorder %s114, %s130
      %p132 = scmp.eq.s32.totalorder %s28, 0
      %p133 = por %p131, %p132
      %p134 = scmp.le.s32.totalorder 1, %s22
      %p135 = scmp.lt.s32.totalorder %s22, 3
      %p136 = pnand %p134, %p135
      %p137 = pneg %p136
      // Predicated region
      $region9: #{tpu_custom_call.1} parent=5 // pred_check
        _
      $region10: #{tpu_custom_call.1} parent=5 // pred_check_branch
        %139 = sbr.rel (%p136) target = $region12
      $region11: #{tpu_custom_call.1} parent=5 // pred_region
        %s140 = ssub.s32 %s22, 1
      $region12: #{tpu_custom_call.1} parent=5 // pred_fallthru
        _
      %p141 = scmp.lt.s32.totalorder %s22, 2
      // Predicated region
      $region13: #{tpu_custom_call.1} parent=5 // pred_check
        %p142 = pneg %p141
      $region14: #{tpu_custom_call.1} parent=5 // pred_check_branch
        %144 = sbr.rel (%p142) target = $region16
      $region15: #{tpu_custom_call.1} parent=5 // pred_region
        // Predicated region
        $region17: #{tpu_custom_call.1} parent=15 // pred_check
          %p145 = pneg %p42
        $region18: #{tpu_custom_call.1} parent=15 // pred_check_branch
          %147 = sbr.rel (%p145) target = $region20
        $region19: #{tpu_custom_call.1} parent=15 // pred_region
          %s148 = sand.u32 %s32, 1
          %s149 = scalar_lea.sflag [#allocation3], %s148
          %s150 = sand.u32 %s32, 1
          %s151 = smul.addr %s150, 112
          %s152 = scalar_lea.vmem [#allocation2], %s151
          %s153 = smul.u32 28, %s22
          %155 = vsyncadd %s149, 0
          %s156 = smul.addr %s153, 4
          %s157 = scalar_lea.hbm %s0, %s156
          %s158 = sshll.u32 %s157, 4
          %s159 = int_to_ptr.hbm [resolvable:$true] %s158
          %s160 = sshll.u32 %s152, 4
          %s161 = int_to_ptr.vmem [resolvable:$true] %s160
          %166 = dma.hbm_to_vmem [thread:$0]  %s159, 1792, %s161, %s149, 64, 64, 4
        $region20: #{tpu_custom_call.1} parent=15 // pred_fallthru
          _
        // Predicated region
        $region21: #{tpu_custom_call.1} parent=15 // pred_check
          %p167 = pneg %p68
        $region22: #{tpu_custom_call.1} parent=15 // pred_check_branch
          %169 = sbr.rel (%p167) target = $region24
        $region23: #{tpu_custom_call.1} parent=15 // pred_region
          %s170 = sand.u32 %s58, 1
          %s171 = scalar_lea.sflag [#allocation6], %s170
          %s172 = sand.u32 %s58, 1
          %s173 = smul.addr %s172, 224
          %s174 = scalar_lea.vmem [#allocation5], %s173
          %s175 = smul.u32 28, %s22
          %177 = vsyncadd %s171, 0
          %s178 = smul.addr %s175, 8
          %s179 = scalar_lea.hbm %s1, %s178
          %s180 = sshll.u32 %s179, 4
          %s181 = int_to_ptr.hbm [resolvable:$true] %s180
          %s182 = sshll.u32 %s174, 4
          %s183 = int_to_ptr.vmem [resolvable:$true] %s182
          %188 = dma.hbm_to_vmem [thread:$0]  %s181, 3584, %s183, %s171, 128, 128, 8
        $region24: #{tpu_custom_call.1} parent=15 // pred_fallthru
          _
      $region16: #{tpu_custom_call.1} parent=5 // pred_fallthru
        _
      %p189 = scmp.le.s32.totalorder 1, %s22
      %p190 = scmp.lt.s32.totalorder %s22, 3
      %p191 = pnand %p189, %p190
      %p192 = pneg %p191
      // Predicated region
      $region25: #{tpu_custom_call.1} parent=5 // pred_check
        _
      $region26: #{tpu_custom_call.1} parent=5 // pred_check_branch
        %194 = sbr.rel (%p191) target = $region28
      $region27: #{tpu_custom_call.1} parent=5 // pred_region
        %s195 = ssub.s32 %s22, 1
        %s196 = sand.u32 %s35, 1
        %s197 = scalar_lea.sflag [#allocation3], %s196
        %s198 = sand.u32 %s35, 1
        %s199 = smul.addr %s198, 112
        %s200 = scalar_lea.vmem [#allocation2], %s199
        // Predicated region
        $region29: #{tpu_custom_call.1} parent=27 // pred_check
          %p201 = pneg %p48
        $region30: #{tpu_custom_call.1} parent=27 // pred_check_branch
          %203 = sbr.rel (%p201) target = $region32
        $region31: #{tpu_custom_call.1} parent=27 // pred_region
          %205 = dma.done %s197, 1792
        $region32: #{tpu_custom_call.1} parent=27 // pred_fallthru
          _
        %s206 = sand.u32 %s61, 1
        %s207 = scalar_lea.sflag [#allocation6], %s206
        %s208 = sand.u32 %s61, 1
        %s209 = smul.addr %s208, 224
        %s210 = scalar_lea.vmem [#allocation5], %s209
        // Predicated region
        $region33: #{tpu_custom_call.1} parent=27 // pred_check
          %p211 = pneg %p74
        $region34: #{tpu_custom_call.1} parent=27 // pred_check_branch
          %213 = sbr.rel (%p211) target = $region36
        $region35: #{tpu_custom_call.1} parent=27 // pred_region
          %215 = dma.done %s207, 3584
        $region36: #{tpu_custom_call.1} parent=27 // pred_fallthru
          _
        %s216 = sand.u32 %s35, 1
        %s217 = scalar_lea.sflag [#allocation3], %s216
        %s218 = sand.u32 %s35, 1
        %s219 = smul.addr %s218, 112
        %s220 = scalar_lea.vmem [#allocation2], %s219
        %p221 = pneg %p48
        %p222 = pneg %p45
        %s223 = sand.u32 %s61, 1
        %s224 = scalar_lea.sflag [#allocation6], %s223
        %s225 = sand.u32 %s61, 1
        %s226 = smul.addr %s225, 224
        %s227 = scalar_lea.vmem [#allocation5], %s226
        %p228 = pneg %p74
        %p229 = pneg %p71
        %p230 = pneg %p100
        %p231 = pneg %p97
        %s232 = sand.u32 %s87, 1
        %s233 = scalar_lea.sflag [#allocation4], %s232
        %s234 = sand.u32 %s87, 1
        %s235 = smul.addr %s234, 224
        %s236 = scalar_lea.vmem [#allocation7], %s235
        %p237 = pneg %p126
        %p238 = pneg %p123
        %s239 = sand.u32 %s113, 1
        %s240 = scalar_lea.sflag [#allocation9], %s239
        %s241 = sand.u32 %s113, 1
        %s242 = smul.addr %s241, 56
        %s243 = scalar_lea.vmem [#allocation8], %s242
        %s244 = smul.u32 28, %s27
        %s245 = smul.u32 28, %s27
        %s246 = smul.u32 28, %s27
        %s247 = smul.u32 7, %s27
        %v253 = vld [vmem:[%s200] sm:$0xf]
        %v254 = vld [vmem:[%s200 + $0x4] sm:$0xf]
        %v255 = vld [vmem:[%s200 + $0x8] sm:$0xf]
        %v256 = vld [vmem:[%s200 + $0xc] sm:$0xf]
        %v257 = vld [vmem:[%s200 + $0x10] sm:$0xf]
        %v258 = vld [vmem:[%s200 + $0x14] sm:$0xf]
        %v259 = vld [vmem:[%s200 + $0x18] sm:$0xf]
        %v260 = vld [vmem:[%s200 + $0x1c] sm:$0xf]
        %v261 = vld [vmem:[%s200 + $0x20] sm:$0xf]
        %v262 = vld [vmem:[%s200 + $0x24] sm:$0xf]
        %v263 = vld [vmem:[%s200 + $0x28] sm:$0xf]
        %v264 = vld [vmem:[%s200 + $0x2c] sm:$0xf]
        %v265 = vld [vmem:[%s200 + $0x30] sm:$0xf]
        %v266 = vld [vmem:[%s200 + $0x34] sm:$0xf]
        %v267 = vld [vmem:[%s200 + $0x38] sm:$0xf]
        %v268 = vld [vmem:[%s200 + $0x3c] sm:$0xf]
        %v269 = vld [vmem:[%s200 + $0x40] sm:$0xf]
        %v270 = vld [vmem:[%s200 + $0x44] sm:$0xf]
        %v271 = vld [vmem:[%s200 + $0x48] sm:$0xf]
        %v272 = vld [vmem:[%s200 + $0x4c] sm:$0xf]
        %v273 = vld [vmem:[%s200 + $0x50] sm:$0xf]
        %v274 = vld [vmem:[%s200 + $0x54] sm:$0xf]
        %v275 = vld [vmem:[%s200 + $0x58] sm:$0xf]
        %v276 = vld [vmem:[%s200 + $0x5c] sm:$0xf]
        %v277 = vld [vmem:[%s200 + $0x60] sm:$0xf]
        %v278 = vld [vmem:[%s200 + $0x64] sm:$0xf]
        %v279 = vld [vmem:[%s200 + $0x68] sm:$0xf]
        %v280 = vld [vmem:[%s200 + $0x6c] sm:$0xf]
        %v281 = vunpack.c.l.b16 %v253
        %v282 = vunpack.c.h.b16 %v253
        %v283 = vunpack.c.l.b16 3436039373
        %v284 = vunpack.c.h.b16 3436039373
        %vm285 = vcmp.ge.s32.totalorder %v281, %v283
        %vm286 = vcmp.ge.s32.totalorder %v282, %v284
        %vm287 = vmpackc.low %vm286, %vm285
        %v288 = vunpack.c.l.b16 %v254
        %v289 = vunpack.c.h.b16 %v254
        %v290 = vunpack.c.l.b16 3436039373
        %v291 = vunpack.c.h.b16 3436039373
        %vm292 = vcmp.ge.s32.totalorder %v288, %v290
        %vm293 = vcmp.ge.s32.totalorder %v289, %v291
        %vm294 = vmpackc.low %vm293, %vm292
        %v295 = vunpack.c.l.b16 %v255
        %v296 = vunpack.c.h.b16 %v255
        %v297 = vunpack.c.l.b16 3436039373
        %v298 = vunpack.c.h.b16 3436039373
        %vm299 = vcmp.ge.s32.totalorder %v295, %v297
        %vm300 = vcmp.ge.s32.totalorder %v296, %v298
        %vm301 = vmpackc.low %vm300, %vm299
        %v302 = vunpack.c.l.b16 %v256
        %v303 = vunpack.c.h.b16 %v256
        %v304 = vunpack.c.l.b16 3436039373
        %v305 = vunpack.c.h.b16 3436039373
        %vm306 = vcmp.ge.s32.totalorder %v302, %v304
        %vm307 = vcmp.ge.s32.totalorder %v303, %v305
        %vm308 = vmpackc.low %vm307, %vm306
        %v309 = vunpack.c.l.b16 %v257
        %v310 = vunpack.c.h.b16 %v257
        %v311 = vunpack.c.l.b16 3436039373
        %v312 = vunpack.c.h.b16 3436039373
        %vm313 = vcmp.ge.s32.totalorder %v309, %v311
        %vm314 = vcmp.ge.s32.totalorder %v310, %v312
        %vm315 = vmpackc.low %vm314, %vm313
        %v316 = vunpack.c.l.b16 %v258
        %v317 = vunpack.c.h.b16 %v258
        %v318 = vunpack.c.l.b16 3436039373
        %v319 = vunpack.c.h.b16 3436039373
        %vm320 = vcmp.ge.s32.totalorder %v316, %v318
        %vm321 = vcmp.ge.s32.totalorder %v317, %v319
        %vm322 = vmpackc.low %vm321, %vm320
        %v323 = vunpack.c.l.b16 %v259
        %v324 = vunpack.c.h.b16 %v259
        %v325 = vunpack.c.l.b16 3436039373
        %v326 = vunpack.c.h.b16 3436039373
        %vm327 = vcmp.ge.s32.totalorder %v323, %v325
        %vm328 = vcmp.ge.s32.totalorder %v324, %v326
        %vm329 = vmpackc.low %vm328, %vm327
        %v330 = vunpack.c.l.b16 %v260
        %v331 = vunpack.c.h.b16 %v260
        %v332 = vunpack.c.l.b16 3436039373
        %v333 = vunpack.c.h.b16 3436039373
        %vm334 = vcmp.ge.s32.totalorder %v330, %v332
        %vm335 = vcmp.ge.s32.totalorder %v331, %v333
        %vm336 = vmpackc.low %vm335, %vm334
        %v337 = vunpack.c.l.b16 %v261
        %v338 = vunpack.c.h.b16 %v261
        %v339 = vunpack.c.l.b16 3436039373
        %v340 = vunpack.c.h.b16 3436039373
        %vm341 = vcmp.ge.s32.totalorder %v337, %v339
        %vm342 = vcmp.ge.s32.totalorder %v338, %v340
        %vm343 = vmpackc.low %vm342, %vm341
        %v344 = vunpack.c.l.b16 %v262
        %v345 = vunpack.c.h.b16 %v262
        %v346 = vunpack.c.l.b16 3436039373
        %v347 = vunpack.c.h.b16 3436039373
        %vm348 = vcmp.ge.s32.totalorder %v344, %v346
        %vm349 = vcmp.ge.s32.totalorder %v345, %v347
        %vm350 = vmpackc.low %vm349, %vm348
        %v351 = vunpack.c.l.b16 %v263
        %v352 = vunpack.c.h.b16 %v263
        %v353 = vunpack.c.l.b16 3436039373
        %v354 = vunpack.c.h.b16 3436039373
        %vm355 = vcmp.ge.s32.totalorder %v351, %v353
        %vm356 = vcmp.ge.s32.totalorder %v352, %v354
        %vm357 = vmpackc.low %vm356, %vm355
        %v358 = vunpack.c.l.b16 %v264
        %v359 = vunpack.c.h.b16 %v264
        %v360 = vunpack.c.l.b16 3436039373
        %v361 = vunpack.c.h.b16 3436039373
        %vm362 = vcmp.ge.s32.totalorder %v358, %v360
        %vm363 = vcmp.ge.s32.totalorder %v359, %v361
        %vm364 = vmpackc.low %vm363, %vm362
        %v365 = vunpack.c.l.b16 %v265
        %v366 = vunpack.c.h.b16 %v265
        %v367 = vunpack.c.l.b16 3436039373
        %v368 = vunpack.c.h.b16 3436039373
        %vm369 = vcmp.ge.s32.totalorder %v365, %v367
        %vm370 = vcmp.ge.s32.totalorder %v366, %v368
        %vm371 = vmpackc.low %vm370, %vm369
        %v372 = vunpack.c.l.b16 %v266
        %v373 = vunpack.c.h.b16 %v266
        %v374 = vunpack.c.l.b16 3436039373
        %v375 = vunpack.c.h.b16 3436039373
        %vm376 = vcmp.ge.s32.totalorder %v372, %v374
        %vm377 = vcmp.ge.s32.totalorder %v373, %v375
        %vm378 = vmpackc.low %vm377, %vm376
        %v379 = vunpack.c.l.b16 %v267
        %v380 = vunpack.c.h.b16 %v267
        %v381 = vunpack.c.l.b16 3436039373
        %v382 = vunpack.c.h.b16 3436039373
        %vm383 = vcmp.ge.s32.totalorder %v379, %v381
        %vm384 = vcmp.ge.s32.totalorder %v380, %v382
        %vm385 = vmpackc.low %vm384, %vm383
        %v386 = vunpack.c.l.b16 %v268
        %v387 = vunpack.c.h.b16 %v268
        %v388 = vunpack.c.l.b16 3436039373
        %v389 = vunpack.c.h.b16 3436039373
        %vm390 = vcmp.ge.s32.totalorder %v386, %v388
        %vm391 = vcmp.ge.s32.totalorder %v387, %v389
        %vm392 = vmpackc.low %vm391, %vm390
        %v393 = vunpack.c.l.b16 %v269
        %v394 = vunpack.c.h.b16 %v269
        %v395 = vunpack.c.l.b16 3436039373
        %v396 = vunpack.c.h.b16 3436039373
        %vm397 = vcmp.ge.s32.totalorder %v393, %v395
        %vm398 = vcmp.ge.s32.totalorder %v394, %v396
        %vm399 = vmpackc.low %vm398, %vm397
        %v400 = vunpack.c.l.b16 %v270
        %v401 = vunpack.c.h.b16 %v270
        %v402 = vunpack.c.l.b16 3436039373
        %v403 = vunpack.c.h.b16 3436039373
        %vm404 = vcmp.ge.s32.totalorder %v400, %v402
        %vm405 = vcmp.ge.s32.totalorder %v401, %v403
        %vm406 = vmpackc.low %vm405, %vm404
        %v407 = vunpack.c.l.b16 %v271
        %v408 = vunpack.c.h.b16 %v271
        %v409 = vunpack.c.l.b16 3436039373
        %v410 = vunpack.c.h.b16 3436039373
        %vm411 = vcmp.ge.s32.totalorder %v407, %v409
        %vm412 = vcmp.ge.s32.totalorder %v408, %v410
        %vm413 = vmpackc.low %vm412, %vm411
        %v414 = vunpack.c.l.b16 %v272
        %v415 = vunpack.c.h.b16 %v272
        %v416 = vunpack.c.l.b16 3436039373
        %v417 = vunpack.c.h.b16 3436039373
        %vm418 = vcmp.ge.s32.totalorder %v414, %v416
        %vm419 = vcmp.ge.s32.totalorder %v415, %v417
        %vm420 = vmpackc.low %vm419, %vm418
        %v421 = vunpack.c.l.b16 %v273
        %v422 = vunpack.c.h.b16 %v273
        %v423 = vunpack.c.l.b16 3436039373
        %v424 = vunpack.c.h.b16 3436039373
        %vm425 = vcmp.ge.s32.totalorder %v421, %v423
        %vm426 = vcmp.ge.s32.totalorder %v422, %v424
        %vm427 = vmpackc.low %vm426, %vm425
        %v428 = vunpack.c.l.b16 %v274
        %v429 = vunpack.c.h.b16 %v274
        %v430 = vunpack.c.l.b16 3436039373
        %v431 = vunpack.c.h.b16 3436039373
        %vm432 = vcmp.ge.s32.totalorder %v428, %v430
        %vm433 = vcmp.ge.s32.totalorder %v429, %v431
        %vm434 = vmpackc.low %vm433, %vm432
        %v435 = vunpack.c.l.b16 %v275
        %v436 = vunpack.c.h.b16 %v275
        %v437 = vunpack.c.l.b16 3436039373
        %v438 = vunpack.c.h.b16 3436039373
        %vm439 = vcmp.ge.s32.totalorder %v435, %v437
        %vm440 = vcmp.ge.s32.totalorder %v436, %v438
        %vm441 = vmpackc.low %vm440, %vm439
        %v442 = vunpack.c.l.b16 %v276
        %v443 = vunpack.c.h.b16 %v276
        %v444 = vunpack.c.l.b16 3436039373
        %v445 = vunpack.c.h.b16 3436039373
        %vm446 = vcmp.ge.s32.totalorder %v442, %v444
        %vm447 = vcmp.ge.s32.totalorder %v443, %v445
        %vm448 = vmpackc.low %vm447, %vm446
        %v449 = vunpack.c.l.b16 %v277
        %v450 = vunpack.c.h.b16 %v277
        %v451 = vunpack.c.l.b16 3436039373
        %v452 = vunpack.c.h.b16 3436039373
        %vm453 = vcmp.ge.s32.totalorder %v449, %v451
        %vm454 = vcmp.ge.s32.totalorder %v450, %v452
        %vm455 = vmpackc.low %vm454, %vm453
        %v456 = vunpack.c.l.b16 %v278
        %v457 = vunpack.c.h.b16 %v278
        %v458 = vunpack.c.l.b16 3436039373
        %v459 = vunpack.c.h.b16 3436039373
        %vm460 = vcmp.ge.s32.totalorder %v456, %v458
        %vm461 = vcmp.ge.s32.totalorder %v457, %v459
        %vm462 = vmpackc.low %vm461, %vm460
        %v463 = vunpack.c.l.b16 %v279
        %v464 = vunpack.c.h.b16 %v279
        %v465 = vunpack.c.l.b16 3436039373
        %v466 = vunpack.c.h.b16 3436039373
        %vm467 = vcmp.ge.s32.totalorder %v463, %v465
        %vm468 = vcmp.ge.s32.totalorder %v464, %v466
        %vm469 = vmpackc.low %vm468, %vm467
        %v470 = vunpack.c.l.b16 %v280
        %v471 = vunpack.c.h.b16 %v280
        %v472 = vunpack.c.l.b16 3436039373
        %v473 = vunpack.c.h.b16 3436039373
        %vm474 = vcmp.ge.s32.totalorder %v470, %v472
        %vm475 = vcmp.ge.s32.totalorder %v471, %v473
        %vm476 = vmpackc.low %vm475, %vm474
        %v477 = vld [vmem:[%s210] sm:$0xff]
        %v478 = vld [vmem:[%s210 + $0x8] sm:$0xff]
        %v479 = vld [vmem:[%s210 + $0x10] sm:$0xff]
        %v480 = vld [vmem:[%s210 + $0x18] sm:$0xff]
        %v481 = vld [vmem:[%s210 + $0x20] sm:$0xff]
        %v482 = vld [vmem:[%s210 + $0x28] sm:$0xff]
        %v483 = vld [vmem:[%s210 + $0x30] sm:$0xff]
        %v484 = vld [vmem:[%s210 + $0x38] sm:$0xff]
        %v485 = vld [vmem:[%s210 + $0x40] sm:$0xff]
        %v486 = vld [vmem:[%s210 + $0x48] sm:$0xff]
        %v487 = vld [vmem:[%s210 + $0x50] sm:$0xff]
        %v488 = vld [vmem:[%s210 + $0x58] sm:$0xff]
        %v489 = vld [vmem:[%s210 + $0x60] sm:$0xff]
        %v490 = vld [vmem:[%s210 + $0x68] sm:$0xff]
        %v491 = vld [vmem:[%s210 + $0x70] sm:$0xff]
        %v492 = vld [vmem:[%s210 + $0x78] sm:$0xff]
        %v493 = vld [vmem:[%s210 + $0x80] sm:$0xff]
        %v494 = vld [vmem:[%s210 + $0x88] sm:$0xff]
        %v495 = vld [vmem:[%s210 + $0x90] sm:$0xff]
        %v496 = vld [vmem:[%s210 + $0x98] sm:$0xff]
        %v497 = vld [vmem:[%s210 + $0xa0] sm:$0xff]
        %v498 = vld [vmem:[%s210 + $0xa8] sm:$0xff]
        %v499 = vld [vmem:[%s210 + $0xb0] sm:$0xff]
        %v500 = vld [vmem:[%s210 + $0xb8] sm:$0xff]
        %v501 = vld [vmem:[%s210 + $0xc0] sm:$0xff]
        %v502 = vld [vmem:[%s210 + $0xc8] sm:$0xff]
        %v503 = vld [vmem:[%s210 + $0xd0] sm:$0xff]
        %v504 = vld [vmem:[%s210 + $0xd8] sm:$0xff]
        %v505 = vsel %vm287, 65537, 0
        %v506 = vsel %vm294, 65537, 0
        %v507 = vsel %vm301, 65537, 0
        %v508 = vsel %vm308, 65537, 0
        %v509 = vsel %vm315, 65537, 0
        %v510 = vsel %vm322, 65537, 0
        %v511 = vsel %vm329, 65537, 0
        %v512 = vsel %vm336, 65537, 0
        %v513 = vsel %vm343, 65537, 0
        %v514 = vsel %vm350, 65537, 0
        %v515 = vsel %vm357, 65537, 0
        %v516 = vsel %vm364, 65537, 0
        %v517 = vsel %vm371, 65537, 0
        %v518 = vsel %vm378, 65537, 0
        %v519 = vsel %vm385, 65537, 0
        %v520 = vsel %vm392, 65537, 0
        %v521 = vsel %vm399, 65537, 0
        %v522 = vsel %vm406, 65537, 0
        %v523 = vsel %vm413, 65537, 0
        %v524 = vsel %vm420, 65537, 0
        %v525 = vsel %vm427, 65537, 0
        %v526 = vsel %vm434, 65537, 0
        %v527 = vsel %vm441, 65537, 0
        %v528 = vsel %vm448, 65537, 0
        %v529 = vsel %vm455, 65537, 0
        %v530 = vsel %vm462, 65537, 0
        %v531 = vsel %vm469, 65537, 0
        %v532 = vsel %vm476, 65537, 0
        %v533 = vunpack.c.l.b16 %v505
        %v534 = vunpack.c.l.b16 %v506
        %v535 = vunpack.c.l.b16 %v507
        %v536 = vunpack.c.l.b16 %v508
        %v537 = vunpack.c.l.b16 %v509
        %v538 = vunpack.c.l.b16 %v510
        %v539 = vunpack.c.l.b16 %v511
        %v540 = vunpack.c.l.b16 %v512
        %v541 = vunpack.c.l.b16 %v513
        %v542 = vunpack.c.l.b16 %v514
        %v543 = vunpack.c.l.b16 %v515
        %v544 = vunpack.c.l.b16 %v516
        %v545 = vunpack.c.l.b16 %v517
        %v546 = vunpack.c.l.b16 %v518
        %v547 = vunpack.c.l.b16 %v519
        %v548 = vunpack.c.l.b16 %v520
        %v549 = vunpack.c.l.b16 %v521
        %v550 = vunpack.c.l.b16 %v522
        %v551 = vunpack.c.l.b16 %v523
        %v552 = vunpack.c.l.b16 %v524
        %v553 = vunpack.c.l.b16 %v525
        %v554 = vunpack.c.l.b16 %v526
        %v555 = vunpack.c.l.b16 %v527
        %v556 = vunpack.c.l.b16 %v528
        %v557 = vunpack.c.l.b16 %v529
        %v558 = vunpack.c.l.b16 %v530
        %v559 = vunpack.c.l.b16 %v531
        %v560 = vunpack.c.l.b16 %v532
        %vm561 = vcmp.ne.s32.totalorder %v533, 0
        %vm562 = vcmp.ne.s32.totalorder %v534, 0
        %vm563 = vcmp.ne.s32.totalorder %v535, 0
        %vm564 = vcmp.ne.s32.totalorder %v536, 0
        %vm565 = vcmp.ne.s32.totalorder %v537, 0
        %vm566 = vcmp.ne.s32.totalorder %v538, 0
        %vm567 = vcmp.ne.s32.totalorder %v539, 0
        %vm568 = vcmp.ne.s32.totalorder %v540, 0
        %vm569 = vcmp.ne.s32.totalorder %v541, 0
        %vm570 = vcmp.ne.s32.totalorder %v542, 0
        %vm571 = vcmp.ne.s32.totalorder %v543, 0
        %vm572 = vcmp.ne.s32.totalorder %v544, 0
        %vm573 = vcmp.ne.s32.totalorder %v545, 0
        %vm574 = vcmp.ne.s32.totalorder %v546, 0
        %vm575 = vcmp.ne.s32.totalorder %v547, 0
        %vm576 = vcmp.ne.s32.totalorder %v548, 0
        %vm577 = vcmp.ne.s32.totalorder %v549, 0
        %vm578 = vcmp.ne.s32.totalorder %v550, 0
        %vm579 = vcmp.ne.s32.totalorder %v551, 0
        %vm580 = vcmp.ne.s32.totalorder %v552, 0
        %vm581 = vcmp.ne.s32.totalorder %v553, 0
        %vm582 = vcmp.ne.s32.totalorder %v554, 0
        %vm583 = vcmp.ne.s32.totalorder %v555, 0
        %vm584 = vcmp.ne.s32.totalorder %v556, 0
        %vm585 = vcmp.ne.s32.totalorder %v557, 0
        %vm586 = vcmp.ne.s32.totalorder %v558, 0
        %vm587 = vcmp.ne.s32.totalorder %v559, 0
        %vm588 = vcmp.ne.s32.totalorder %v560, 0
        %v589 = vsel %vm561, %v477, 0.0
        %v590 = vsel %vm562, %v478, 0.0
        %v591 = vsel %vm563, %v479, 0.0
        %v592 = vsel %vm564, %v480, 0.0
        %v593 = vsel %vm565, %v481, 0.0
        %v594 = vsel %vm566, %v482, 0.0
        %v595 = vsel %vm567, %v483, 0.0
        %v596 = vsel %vm568, %v484, 0.0
        %v597 = vsel %vm569, %v485, 0.0
        %v598 = vsel %vm570, %v486, 0.0
        %v599 = vsel %vm571, %v487, 0.0
        %v600 = vsel %vm572, %v488, 0.0
        %v601 = vsel %vm573, %v489, 0.0
        %v602 = vsel %vm574, %v490, 0.0
        %v603 = vsel %vm575, %v491, 0.0
        %v604 = vsel %vm576, %v492, 0.0
        %v605 = vsel %vm577, %v493, 0.0
        %v606 = vsel %vm578, %v494, 0.0
        %v607 = vsel %vm579, %v495, 0.0
        %v608 = vsel %vm580, %v496, 0.0
        %v609 = vsel %vm581, %v497, 0.0
        %v610 = vsel %vm582, %v498, 0.0
        %v611 = vsel %vm583, %v499, 0.0
        %v612 = vsel %vm584, %v500, 0.0
        %v613 = vsel %vm585, %v501, 0.0
        %v614 = vsel %vm586, %v502, 0.0
        %v615 = vsel %vm587, %v503, 0.0
        %v616 = vsel %vm588, %v504, 0.0
        %617 = vst [vmem:[%s236] sm:$0xff] %v589
        %618 = vst [vmem:[%s236 + $0x8] sm:$0xff] %v590
        %619 = vst [vmem:[%s236 + $0x10] sm:$0xff] %v591
        %620 = vst [vmem:[%s236 + $0x18] sm:$0xff] %v592
        %621 = vst [vmem:[%s236 + $0x20] sm:$0xff] %v593
        %622 = vst [vmem:[%s236 + $0x28] sm:$0xff] %v594
        %623 = vst [vmem:[%s236 + $0x30] sm:$0xff] %v595
        %624 = vst [vmem:[%s236 + $0x38] sm:$0xff] %v596
        %625 = vst [vmem:[%s236 + $0x40] sm:$0xff] %v597
        %626 = vst [vmem:[%s236 + $0x48] sm:$0xff] %v598
        %627 = vst [vmem:[%s236 + $0x50] sm:$0xff] %v599
        %628 = vst [vmem:[%s236 + $0x58] sm:$0xff] %v600
        %629 = vst [vmem:[%s236 + $0x60] sm:$0xff] %v601
        %630 = vst [vmem:[%s236 + $0x68] sm:$0xff] %v602
        %631 = vst [vmem:[%s236 + $0x70] sm:$0xff] %v603
        %632 = vst [vmem:[%s236 + $0x78] sm:$0xff] %v604
        %633 = vst [vmem:[%s236 + $0x80] sm:$0xff] %v605
        %634 = vst [vmem:[%s236 + $0x88] sm:$0xff] %v606
        %635 = vst [vmem:[%s236 + $0x90] sm:$0xff] %v607
        %636 = vst [vmem:[%s236 + $0x98] sm:$0xff] %v608
        %637 = vst [vmem:[%s236 + $0xa0] sm:$0xff] %v609
        %638 = vst [vmem:[%s236 + $0xa8] sm:$0xff] %v610
        %639 = vst [vmem:[%s236 + $0xb0] sm:$0xff] %v611
        %640 = vst [vmem:[%s236 + $0xb8] sm:$0xff] %v612
        %641 = vst [vmem:[%s236 + $0xc0] sm:$0xff] %v613
        %642 = vst [vmem:[%s236 + $0xc8] sm:$0xff] %v614
        %643 = vst [vmem:[%s236 + $0xd0] sm:$0xff] %v615
        %644 = vst [vmem:[%s236 + $0xd8] sm:$0xff] %v616
        %v645 = vpack.c.b8 %v505, %v505
        %v646 = vpack.c.b8 %v506, %v506
        %v647 = vpack.c.b8 %v507, %v507
        %v648 = vpack.c.b8 %v508, %v508
        %v649 = vpack.c.b8 %v509, %v509
        %v650 = vpack.c.b8 %v510, %v510
        %v651 = vpack.c.b8 %v511, %v511
        %v652 = vpack.c.b8 %v512, %v512
        %v653 = vpack.c.b8 %v513, %v513
        %v654 = vpack.c.b8 %v514, %v514
        %v655 = vpack.c.b8 %v515, %v515
        %v656 = vpack.c.b8 %v516, %v516
        %v657 = vpack.c.b8 %v517, %v517
        %v658 = vpack.c.b8 %v518, %v518
        %v659 = vpack.c.b8 %v519, %v519
        %v660 = vpack.c.b8 %v520, %v520
        %v661 = vpack.c.b8 %v521, %v521
        %v662 = vpack.c.b8 %v522, %v522
        %v663 = vpack.c.b8 %v523, %v523
        %v664 = vpack.c.b8 %v524, %v524
        %v665 = vpack.c.b8 %v525, %v525
        %v666 = vpack.c.b8 %v526, %v526
        %v667 = vpack.c.b8 %v527, %v527
        %v668 = vpack.c.b8 %v528, %v528
        %v669 = vpack.c.b8 %v529, %v529
        %v670 = vpack.c.b8 %v530, %v530
        %v671 = vpack.c.b8 %v531, %v531
        %v672 = vpack.c.b8 %v532, %v532
        %vm673 = vnez %v645
        %vm674 = vnez %v646
        %vm675 = vnez %v647
        %vm676 = vnez %v648
        %vm677 = vnez %v649
        %vm678 = vnez %v650
        %vm679 = vnez %v651
        %vm680 = vnez %v652
        %vm681 = vnez %v653
        %vm682 = vnez %v654
        %vm683 = vnez %v655
        %vm684 = vnez %v656
        %vm685 = vnez %v657
        %vm686 = vnez %v658
        %vm687 = vnez %v659
        %vm688 = vnez %v660
        %vm689 = vnez %v661
        %vm690 = vnez %v662
        %vm691 = vnez %v663
        %vm692 = vnez %v664
        %vm693 = vnez %v665
        %vm694 = vnez %v666
        %vm695 = vnez %v667
        %vm696 = vnez %v668
        %vm697 = vnez %v669
        %vm698 = vnez %v670
        %vm699 = vnez %v671
        %vm700 = vnez %v672
        %v701 = vsel %vm673, 16843009, 0
        %v702 = vsel %vm674, 16843009, 0
        %v703 = vsel %vm675, 16843009, 0
        %v704 = vsel %vm676, 16843009, 0
        %v705 = vsel %vm677, 16843009, 0
        %v706 = vsel %vm678, 16843009, 0
        %v707 = vsel %vm679, 16843009, 0
        %v708 = vsel %vm680, 16843009, 0
        %v709 = vsel %vm681, 16843009, 0
        %v710 = vsel %vm682, 16843009, 0
        %v711 = vsel %vm683, 16843009, 0
        %v712 = vsel %vm684, 16843009, 0
        %v713 = vsel %vm685, 16843009, 0
        %v714 = vsel %vm686, 16843009, 0
        %v715 = vsel %vm687, 16843009, 0
        %v716 = vsel %vm688, 16843009, 0
        %v717 = vsel %vm689, 16843009, 0
        %v718 = vsel %vm690, 16843009, 0
        %v719 = vsel %vm691, 16843009, 0
        %v720 = vsel %vm692, 16843009, 0
        %v721 = vsel %vm693, 16843009, 0
        %v722 = vsel %vm694, 16843009, 0
        %v723 = vsel %vm695, 16843009, 0
        %v724 = vsel %vm696, 16843009, 0
        %v725 = vsel %vm697, 16843009, 0
        %v726 = vsel %vm698, 16843009, 0
        %v727 = vsel %vm699, 16843009, 0
        %v728 = vsel %vm700, 16843009, 0
        %v729 = vunpack.c.0.s8 %v701
        %v730 = vunpack.c.0.s8 %v702
        %v731 = vunpack.c.0.s8 %v703
        %v732 = vunpack.c.0.s8 %v704
        %v733 = vunpack.c.0.s8 %v705
        %v734 = vunpack.c.0.s8 %v706
        %v735 = vunpack.c.0.s8 %v707
        %v736 = vunpack.c.0.s8 %v708
        %v737 = vunpack.c.0.s8 %v709
        %v738 = vunpack.c.0.s8 %v710
        %v739 = vunpack.c.0.s8 %v711
        %v740 = vunpack.c.0.s8 %v712
        %v741 = vunpack.c.0.s8 %v713
        %v742 = vunpack.c.0.s8 %v714
        %v743 = vunpack.c.0.s8 %v715
        %v744 = vunpack.c.0.s8 %v716
        %v745 = vunpack.c.0.s8 %v717
        %v746 = vunpack.c.0.s8 %v718
        %v747 = vunpack.c.0.s8 %v719
        %v748 = vunpack.c.0.s8 %v720
        %v749 = vunpack.c.0.s8 %v721
        %v750 = vunpack.c.0.s8 %v722
        %v751 = vunpack.c.0.s8 %v723
        %v752 = vunpack.c.0.s8 %v724
        %v753 = vunpack.c.0.s8 %v725
        %v754 = vunpack.c.0.s8 %v726
        %v755 = vunpack.c.0.s8 %v727
        %v756 = vunpack.c.0.s8 %v728
        %v757 = vpack.c.b16 %v730, %v729
        %v758 = vpack.c.b16 %v732, %v731
        %v759 = vpack.c.b8 %v758, %v757
        %v760 = vpack.c.b16 %v734, %v733
        %v761 = vpack.c.b16 %v736, %v735
        %v762 = vpack.c.b8 %v761, %v760
        %v763 = vpack.c.b16 %v738, %v737
        %v764 = vpack.c.b16 %v740, %v739
        %v765 = vpack.c.b8 %v764, %v763
        %v766 = vpack.c.b16 %v742, %v741
        %v767 = vpack.c.b16 %v744, %v743
        %v768 = vpack.c.b8 %v767, %v766
        %v769 = vpack.c.b16 %v746, %v745
        %v770 = vpack.c.b16 %v748, %v747
        %v771 = vpack.c.b8 %v770, %v769
        %v772 = vpack.c.b16 %v750, %v749
        %v773 = vpack.c.b16 %v752, %v751
        %v774 = vpack.c.b8 %v773, %v772
        %v775 = vpack.c.b16 %v754, %v753
        %v776 = vpack.c.b16 %v756, %v755
        %v777 = vpack.c.b8 %v776, %v775
        %vm778 = vnez %v759
        %vm779 = vnez %v762
        %vm780 = vnez %v765
        %vm781 = vnez %v768
        %vm782 = vnez %v771
        %vm783 = vnez %v774
        %vm784 = vnez %v777
        %v785 = vsel %vm778, 16843009, 0
        %v786 = vsel %vm779, 16843009, 0
        %v787 = vsel %vm780, 16843009, 0
        %v788 = vsel %vm781, 16843009, 0
        %v789 = vsel %vm782, 16843009, 0
        %v790 = vsel %vm783, 16843009, 0
        %v791 = vsel %vm784, 16843009, 0
        %792 = vst [vmem:[%s243] sm:$0xff] %v785
        %793 = vst [vmem:[%s243 + $0x8] sm:$0xff] %v786
        %794 = vst [vmem:[%s243 + $0x10] sm:$0xff] %v787
        %795 = vst [vmem:[%s243 + $0x18] sm:$0xff] %v788
        %796 = vst [vmem:[%s243 + $0x20] sm:$0xff] %v789
        %797 = vst [vmem:[%s243 + $0x28] sm:$0xff] %v790
        %798 = vst [vmem:[%s243 + $0x30] sm:$0xff] %v791
        %s799 = sand.u32 %s87, 1
        %s800 = scalar_lea.sflag [#allocation4], %s799
        %s801 = sand.u32 %s87, 1
        %s802 = smul.addr %s801, 224
        %s803 = scalar_lea.vmem [#allocation7], %s802
        %s804 = sand.u32 %s113, 1
        %s805 = scalar_lea.sflag [#allocation9], %s804
        %s806 = sand.u32 %s113, 1
        %s807 = smul.addr %s806, 56
        %s808 = scalar_lea.vmem [#allocation8], %s807
        // Predicated region
        $region37: #{tpu_custom_call.1} parent=27 // pred_check
          %p809 = pneg %p97
        $region38: #{tpu_custom_call.1} parent=27 // pred_check_branch
          %811 = sbr.rel (%p809) target = $region40
        $region39: #{tpu_custom_call.1} parent=27 // pred_region
          %s812 = smul.u32 28, %s27
          %814 = vsyncadd %s800, 0
          %s815 = smul.addr %s812, 8
          %s816 = scalar_lea.hbm %s2, %s815
          %s817 = sshll.u32 %s803, 4
          %s818 = int_to_ptr.vmem [resolvable:$true] %s817
          %s819 = sshll.u32 %s816, 4
          %s820 = int_to_ptr.hbm [resolvable:$true] %s819
          %825 = dma.vmem_to_hbm [thread:$0]  %s818, 3584, %s820, %s800, 128, 128, 8
        $region40: #{tpu_custom_call.1} parent=27 // pred_fallthru
          _
        // Predicated region
        $region41: #{tpu_custom_call.1} parent=27 // pred_check
          %p826 = pneg %p123
        $region42: #{tpu_custom_call.1} parent=27 // pred_check_branch
          %828 = sbr.rel (%p826) target = $region44
        $region43: #{tpu_custom_call.1} parent=27 // pred_region
          %s829 = smul.u32 7, %s27
          %831 = vsyncadd %s805, 0
          %s832 = smul.addr %s829, 8
          %s833 = scalar_lea.hbm %s3, %s832
          %s834 = sshll.u32 %s808, 4
          %s835 = int_to_ptr.vmem [resolvable:$true] %s834
          %s836 = sshll.u32 %s833, 4
          %s837 = int_to_ptr.hbm [resolvable:$true] %s836
          %842 = dma.vmem_to_hbm [thread:$0]  %s835, 896, %s837, %s805, 128, 128, 8
        $region44: #{tpu_custom_call.1} parent=27 // pred_fallthru
          _
      $region28: #{tpu_custom_call.1} parent=5 // pred_fallthru
        _
      %p843 = scmp.le.s32.totalorder 2, %s22
      // Predicated region
      $region45: #{tpu_custom_call.1} parent=5 // pred_check
        %p844 = pneg %p843
      $region46: #{tpu_custom_call.1} parent=5 // pred_check_branch
        %846 = sbr.rel (%p844) target = $region48
      $region47: #{tpu_custom_call.1} parent=5 // pred_region
        %s847 = ssub.s32 %s22, 2
        // Predicated region
        $region49: #{tpu_custom_call.1} parent=47 // pred_check
          %p848 = pneg %p103
        $region50: #{tpu_custom_call.1} parent=47 // pred_check_branch
          %850 = sbr.rel (%p848) target = $region52
        $region51: #{tpu_custom_call.1} parent=47 // pred_region
          %s851 = sand.u32 %s88, 1
          %s852 = scalar_lea.sflag [#allocation4], %s851
          %s853 = sand.u32 %s88, 1
          %s854 = smul.addr %s853, 224
          %s855 = scalar_lea.vmem [#allocation7], %s854
          %857 = dma.done %s852, 3584
        $region52: #{tpu_custom_call.1} parent=47 // pred_fallthru
          _
        // Predicated region
        $region53: #{tpu_custom_call.1} parent=47 // pred_check
          %p858 = pneg %p129
        $region54: #{tpu_custom_call.1} parent=47 // pred_check_branch
          %860 = sbr.rel (%p858) target = $region56
        $region55: #{tpu_custom_call.1} parent=47 // pred_region
          %s861 = sand.u32 %s114, 1
          %s862 = scalar_lea.sflag [#allocation9], %s861
          %s863 = sand.u32 %s114, 1
          %s864 = smul.addr %s863, 56
          %s865 = scalar_lea.vmem [#allocation8], %s864
          %867 = dma.done %s862, 896
        $region56: #{tpu_custom_call.1} parent=47 // pred_fallthru
          _
      $region48: #{tpu_custom_call.1} parent=5 // pred_fallthru
        _
    $region6: #{tpu_custom_call.1} parent=1 // loop_footer
      %s26 = sadd.s32 1, %s22
    $region7: #{tpu_custom_call.1} parent=1 // loop_footer_branch
      %21 = sbr.rel target = $region3
    $region8: #{tpu_custom_call.1} parent=1 // loop_exit
      _
    %868 = vsyncpa [#allocation3], 1
    %s869 = scalar_lea.sflag [#allocation3], 1
    %870 = vsyncpa %s869, 1
    %871 = vsyncpa [#allocation6], 1
    %s872 = scalar_lea.sflag [#allocation6], 1
    %873 = vsyncpa %s872, 1
    %874 = vsyncpa [#allocation4], 1
    %s875 = scalar_lea.sflag [#allocation4], 1
    %876 = vsyncpa %s875, 1
    %877 = vsyncpa [#allocation9], 1
    %s878 = scalar_lea.sflag [#allocation9], 1
    %879 = vsyncpa %s878, 1

</llo_original>
